<compile_context>
chip_gen: v5e
topology: v5e:2x2
jax: 0.10.0
libtpu: 0.0.40
codegen_flags: <defaults>
</compile_context>

<pallas_src>
import functools

import jax
import jax.numpy as jnp
from jax.experimental import pallas as pl
from jax.experimental.pallas import tpu as pltpu


# ------------------------------------------------------------------ tiled matmul (+bias, optional fused residual)

def _matmul_bias_kernel(x_ref, w_ref, b_ref, o_ref, acc_ref):
    k = pl.program_id(2)

    @pl.when(k == 0)
    def _():
        acc_ref[...] = jnp.zeros_like(acc_ref)

    acc_ref[...] += jnp.dot(x_ref[...], w_ref[...],
                            preferred_element_type=jnp.float32)

    @pl.when(k == pl.num_programs(2) - 1)
    def _():
        o_ref[...] = (acc_ref[...] + b_ref[...]).astype(o_ref.dtype)


def _matmul_bias_res_kernel(x_ref, w_ref, b_ref, r_ref, o_ref, acc_ref):
    k = pl.program_id(2)

    @pl.when(k == 0)
    def _():
        acc_ref[...] = jnp.zeros_like(acc_ref)

    acc_ref[...] += jnp.dot(x_ref[...], w_ref[...],
                            preferred_element_type=jnp.float32)

    @pl.when(k == pl.num_programs(2) - 1)
    def _():
        o_ref[...] = (acc_ref[...] + b_ref[...] + r_ref[...]).astype(o_ref.dtype)


def _pad2d(a, rows, cols):
    r, c = a.shape
    if r == rows and c == cols:
        return a
    return jnp.pad(a, ((0, rows - r), (0, cols - c)))


def matmul_bias(x, w, b, residual=None, *, tm=128, tn=128, tk=128):
    """out = x @ w + b (+ residual). bf16 MXU operands, f32 accumulation."""
    M, K = x.shape
    K2, N = w.shape
    assert K == K2
    Mp = pl.cdiv(M, tm) * tm
    Np = pl.cdiv(N, tn) * tn
    Kp = pl.cdiv(K, tk) * tk

    xp = _pad2d(x.astype(jnp.float32), Mp, Kp).astype(jnp.bfloat16)
    wp = _pad2d(w.astype(jnp.float32), Kp, Np).astype(jnp.bfloat16)
    bp = jnp.pad(b.astype(jnp.float32), (0, Np - N)).reshape(1, Np)

    grid = (Mp // tm, Np // tn, Kp // tk)
    in_specs = [
        pl.BlockSpec((tm, tk), lambda i, j, k: (i, k)),
        pl.BlockSpec((tk, tn), lambda i, j, k: (k, j)),
        pl.BlockSpec((1, tn), lambda i, j, k: (0, j)),
    ]
    args = [xp, wp, bp]
    kern = _matmul_bias_kernel
    if residual is not None:
        rp = _pad2d(residual.astype(jnp.float32), Mp, Np)
        in_specs.append(pl.BlockSpec((tm, tn), lambda i, j, k: (i, j)))
        args.append(rp)
        kern = _matmul_bias_res_kernel

    out = pl.pallas_call(
        kern,
        out_shape=jax.ShapeDtypeStruct((Mp, Np), jnp.float32),
        grid=grid,
        in_specs=in_specs,
        out_specs=pl.BlockSpec((tm, tn), lambda i, j, k: (i, j)),
        scratch_shapes=[pltpu.VMEM((tm, tn), jnp.float32)],
        compiler_params=pltpu.CompilerParams(
            dimension_semantics=("parallel", "parallel", "arbitrary")),
    )(*args)
    return out[:M, :N]


# ------------------------------------------------------------------ fused GroupNorm (32 groups, eps=1e-6, affine)

def _groupnorm_kernel(x_ref, g_ref, b_ref, a_ref, o_ref, *, eps):
    x = x_ref[0]                       # (HW, C) f32, channels on lanes
    a = a_ref[...]                     # (C, C) group-averaging matrix
    inv_hw = 1.0 / x.shape[0]
    mu_c = jnp.sum(x, axis=0, keepdims=True) * inv_hw                   # (1, C)
    mu_g = jnp.dot(mu_c, a, preferred_element_type=jnp.float32)         # group mean
    d = x - mu_g
    var_c = jnp.sum(d * d, axis=0, keepdims=True) * inv_hw
    var_g = jnp.dot(var_c, a, preferred_element_type=jnp.float32)       # group var
    y = d * jax.lax.rsqrt(var_g + eps)
    o_ref[0] = y * g_ref[...] + b_ref[...]


def pallas_group_norm(x3, gamma, beta, *, num_groups=32, eps=1e-6):
    B, HW, C = x3.shape
    cg = C // num_groups
    g_idx = jnp.arange(C) // cg
    amat = (g_idx[:, None] == g_idx[None, :]).astype(jnp.float32) / float(cg)
    kern = functools.partial(_groupnorm_kernel, eps=eps)
    # TODO(synk): also tile the HW axis (two-pass stats over row tiles) when H*W is
    # large enough that a single (HW, C) slab stresses the 64 MiB VMEM budget on v7x.
    return pl.pallas_call(
        kern,
        out_shape=jax.ShapeDtypeStruct((B, HW, C), jnp.float32),
        grid=(B,),
        in_specs=[
            pl.BlockSpec((1, HW, C), lambda b: (b, 0, 0)),
            pl.BlockSpec((1, C), lambda b: (0, 0)),
            pl.BlockSpec((1, C), lambda b: (0, 0)),
            pl.BlockSpec((C, C), lambda b: (0, 0)),
        ],
        out_specs=pl.BlockSpec((1, HW, C), lambda b: (b, 0, 0)),
        compiler_params=pltpu.CompilerParams(dimension_semantics=("parallel",)),
    )(x3.astype(jnp.float32),
      gamma.reshape(1, C).astype(jnp.float32),
      beta.reshape(1, C).astype(jnp.float32),
      amat)


# ------------------------------------------------------------------ fused softmax attention (scale folded into q)

def _attn_kernel(q_ref, k_ref, v_ref, o_ref):
    q = q_ref[0]                       # (HW, C) bf16, scale already folded in
    k = k_ref[0]
    v = v_ref[0]
    s = jax.lax.dot_general(q, k, (((1,), (1,)), ((), ())),
                            preferred_element_type=jnp.float32)          # (HW, HW)
    s = s - jnp.max(s, axis=-1, keepdims=True)
    p = jnp.exp(s)
    p = p * pl.reciprocal(jnp.sum(p, axis=-1, keepdims=True), approx=True)
    o_ref[0] = jnp.dot(p.astype(v.dtype), v,
                       preferred_element_type=jnp.float32)               # (HW, C)


def pallas_attention(q, k, v):
    B, HW, C = q.shape
    # TODO(synk): switch to a flash-style kernel (grid over query tiles, running
    # softmax) when HW grows past ~1024 so the (HW, HW) score matrix need not be
    # fully resident in VMEM.
    spec = pl.BlockSpec((1, HW, C), lambda b: (b, 0, 0))
    return pl.pallas_call(
        _attn_kernel,
        out_shape=jax.ShapeDtypeStruct((B, HW, C), jnp.float32),
        grid=(B,),
        in_specs=[spec, spec, spec],
        out_specs=spec,
        compiler_params=pltpu.CompilerParams(dimension_semantics=("parallel",)),
    )(q.astype(jnp.bfloat16), k.astype(jnp.bfloat16), v.astype(jnp.bfloat16))


# ------------------------------------------------------------------ AttnBlock forward

def attn_block_forward(params, x):
    B, C, H, W = x.shape
    HW = H * W
    scale = float(C) ** (-0.5)

    # NCHW -> channels-last (B, HW, C) at the module boundary only.
    xf = jnp.transpose(x, (0, 2, 3, 1)).reshape(B, HW, C)

    h = pallas_group_norm(xf, params["norm_g"], params["norm_b"],
                          num_groups=32, eps=1e-6)

    # Fused q/k/v projection: one (B*HW, C) @ (C, 3C) matmul, softmax scale folded
    # into the q weights/bias.
    wq = params["wq"][:, :, 0, 0].T * scale
    wk = params["wk"][:, :, 0, 0].T
    wv = params["wv"][:, :, 0, 0].T
    wqkv = jnp.concatenate([wq, wk, wv], axis=1)                     # (C, 3C)
    bqkv = jnp.concatenate([params["bq"] * scale, params["bk"], params["bv"]])

    qkv = matmul_bias(h.reshape(B * HW, C), wqkv, bqkv)              # (B*HW, 3C)
    qkv = qkv.reshape(B, HW, 3 * C)
    q, k, v = qkv[..., :C], qkv[..., C:2 * C], qkv[..., 2 * C:]

    attn = pallas_attention(q, k, v)                                 # (B, HW, C)

    # proj_out 1x1 conv with the residual add fused into the matmul epilogue.
    wp = params["wp"][:, :, 0, 0].T
    out = matmul_bias(attn.reshape(B * HW, C), wp, params["bp"],
                      residual=xf.reshape(B * HW, C))                # (B*HW, C)

    return jnp.transpose(out.reshape(B, H, W, C), (0, 3, 1, 2))


# ------------------------------------------------------------------ plain-JAX reference (for validation)

def reference_attn_block(params, x):
    B, C, H, W = x.shape
    G = 32
    xr = x.reshape(B, G, C // G, H, W)
    mean = xr.mean(axis=(2, 3, 4), keepdims=True)
    var = jnp.mean((xr - mean) ** 2, axis=(2, 3, 4), keepdims=True)
    h = ((xr - mean) / jnp.sqrt(var + 1e-6)).reshape(B, C, H, W)
    h = h * params["norm_g"][None, :, None, None] + params["norm_b"][None, :, None, None]

    def conv1x1(t, w, b):
        return jnp.einsum("bchw,oc->bohw", t, w[:, :, 0, 0]) + b[None, :, None, None]

    q = conv1x1(h, params["wq"], params["bq"])
    k = conv1x1(h, params["wk"], params["bk"])
    v = conv1x1(h, params["wv"], params["bv"])
    q = q.reshape(B, C, H * W).transpose(0, 2, 1)
    k = k.reshape(B, C, H * W)
    w_ = jnp.einsum("bic,bcj->bij", q, k) * (float(C) ** (-0.5))
    w_ = jax.nn.softmax(w_, axis=2)
    v = v.reshape(B, C, H * W)
    h_ = jnp.einsum("bcj,bij->bci", v, w_)
    h_ = h_.reshape(B, C, H, W)
    h_ = conv1x1(h_, params["wp"], params["bp"])
    return x + h_


# ------------------------------------------------------------------ params & main

def init_params(key, C):
    ks = jax.random.split(key, 10)
    lim = 1.0 / (C ** 0.5)

    def conv1x1_init(kw, kb):
        w = jax.random.uniform(kw, (C, C, 1, 1), minval=-lim, maxval=lim,
                               dtype=jnp.float32)
        b = jax.random.uniform(kb, (C,), minval=-lim, maxval=lim,
                               dtype=jnp.float32)
        return w, b

    wq, bq = conv1x1_init(ks[0], ks[1])
    wk, bk = conv1x1_init(ks[2], ks[3])
    wv, bv = conv1x1_init(ks[4], ks[5])
    wp, bp = conv1x1_init(ks[6], ks[7])
    return {
        "norm_g": 1.0 + 0.1 * jax.random.normal(ks[8], (C,), dtype=jnp.float32),
        "norm_b": 0.1 * jax.random.normal(ks[9], (C,), dtype=jnp.float32),
        "wq": wq, "bq": bq, "wk": wk, "bk": bk,
        "wv": wv, "bv": bv, "wp": wp, "bp": bp,
    }


if __name__ == "__main__":
    B, C, H, W = 2, 64, 8, 8          # C must be a multiple of 32 for GroupNorm(32)
    key = jax.random.PRNGKey(0)
    pkey, xkey = jax.random.split(key)
    params = init_params(pkey, C)
    x = jax.random.normal(xkey, (B, C, H, W), dtype=jnp.float32)

    fwd = jax.jit(attn_block_forward)
    out = jax.block_until_ready(fwd(params, x))

    assert out.shape == (B, C, H, W), out.shape
    assert bool(jnp.all(jnp.isfinite(out)))

    ref = reference_attn_block(params, x)
    err = float(jnp.max(jnp.abs(out - ref)))
    assert err < 5e-2, f"max abs err vs reference: {err}"
    print("KERNEL_OK")
</pallas_src>

<mosaic_0001>
module attributes {stable_mosaic.version = 11 : i64} {
  func.func @_groupnorm_kernel(%arg0: i32, %arg1: memref<1x64x64xf32, #tpu.memory_space<vmem>>, %arg2: memref<1x64xf32, #tpu.memory_space<vmem>>, %arg3: memref<1x64xf32, #tpu.memory_space<vmem>>, %arg4: memref<64x64xf32, #tpu.memory_space<vmem>>, %arg5: memref<1x64x64xf32, #tpu.memory_space<vmem>>) attributes {dimension_semantics = [#tpu.dimension_semantics<parallel>], iteration_bounds = array<i64: 2>, scalar_prefetch = 0 : i64, scratch_operands = 0 : i64, tpu.core_type = #tpu.core_type<tc>, window_params = [{transform_indices = @transform_0, window_bounds = array<i64: 1, 64, 64>}, {pipeline_mode = #tpu.pipeline_mode<synchronous>, transform_indices = @transform_1, window_bounds = array<i64: 1, 64>}, {pipeline_mode = #tpu.pipeline_mode<synchronous>, transform_indices = @transform_2, window_bounds = array<i64: 1, 64>}, {pipeline_mode = #tpu.pipeline_mode<synchronous>, transform_indices = @transform_3, window_bounds = array<i64: 64, 64>}, {transform_indices = @transform_4, window_bounds = array<i64: 1, 64, 64>}]} {
    %c0 = arith.constant 0 : index
    %c0_0 = arith.constant 0 : index
    %c0_1 = arith.constant 0 : index
    %0 = vector.load %arg1[%c0, %c0_0, %c0_1] : memref<1x64x64xf32, #tpu.memory_space<vmem>>, vector<1x64x64xf32>
    %1 = vector.shape_cast %0 : vector<1x64x64xf32> to vector<64x64xf32>
    %c0_2 = arith.constant 0 : index
    %c0_3 = arith.constant 0 : index
    %2 = vector.load %arg4[%c0_2, %c0_3] : memref<64x64xf32, #tpu.memory_space<vmem>>, vector<64x64xf32>
    %cst = arith.constant dense<0.000000e+00> : vector<64xf32>
    %3 = vector.multi_reduction <add>, %1, %cst [0] : vector<64x64xf32> to vector<64xf32>
    %4 = vector.shape_cast %3 : vector<64xf32> to vector<1x64xf32>
    %cst_4 = arith.constant 1.562500e-02 : f32
    %5 = vector.broadcast %cst_4 : f32 to vector<1x64xf32>
    %6 = arith.mulf %4, %5 : vector<1x64xf32>
    %cst_5 = arith.constant dense<0.000000e+00> : vector<1x64xf32>
    %7 = tpu.matmul %6, %2, %cst_5 {dimension_numbers = #tpu.dot_dimension_numbers<[1], [0], [0], [1], [0, 0, 1, 1], [], []>} : vector<1x64xf32>, vector<64x64xf32>, vector<1x64xf32> -> vector<1x64xf32>
    %8 = vector.broadcast %7 : vector<1x64xf32> to vector<64x64xf32>
    %9 = arith.subf %1, %8 : vector<64x64xf32>
    %10 = arith.mulf %9, %9 : vector<64x64xf32>
    %cst_6 = arith.constant dense<0.000000e+00> : vector<64xf32>
    %11 = vector.multi_reduction <add>, %10, %cst_6 [0] : vector<64x64xf32> to vector<64xf32>
    %12 = vector.shape_cast %11 : vector<64xf32> to vector<1x64xf32>
    %cst_7 = arith.constant 1.562500e-02 : f32
    %13 = vector.broadcast %cst_7 : f32 to vector<1x64xf32>
    %14 = arith.mulf %12, %13 : vector<1x64xf32>
    %cst_8 = arith.constant dense<0.000000e+00> : vector<1x64xf32>
    %15 = tpu.matmul %14, %2, %cst_8 {dimension_numbers = #tpu.dot_dimension_numbers<[1], [0], [0], [1], [0, 0, 1, 1], [], []>} : vector<1x64xf32>, vector<64x64xf32>, vector<1x64xf32> -> vector<1x64xf32>
    %cst_9 = arith.constant 9.99999997E-7 : f32
    %16 = vector.broadcast %cst_9 : f32 to vector<1x64xf32>
    %17 = arith.addf %15, %16 : vector<1x64xf32>
    %18 = math.rsqrt %17 : vector<1x64xf32>
    %19 = vector.broadcast %18 : vector<1x64xf32> to vector<64x64xf32>
    %20 = arith.mulf %9, %19 : vector<64x64xf32>
    %c0_10 = arith.constant 0 : index
    %c0_11 = arith.constant 0 : index
    %21 = vector.load %arg2[%c0_10, %c0_11] : memref<1x64xf32, #tpu.memory_space<vmem>>, vector<1x64xf32>
    %22 = vector.broadcast %21 : vector<1x64xf32> to vector<64x64xf32>
    %23 = arith.mulf %20, %22 : vector<64x64xf32>
    %c0_12 = arith.constant 0 : index
    %c0_13 = arith.constant 0 : index
    %24 = vector.load %arg3[%c0_12, %c0_13] : memref<1x64xf32, #tpu.memory_space<vmem>>, vector<1x64xf32>
    %25 = vector.broadcast %24 : vector<1x64xf32> to vector<64x64xf32>
    %26 = arith.addf %23, %25 : vector<64x64xf32>
    %c0_14 = arith.constant 0 : index
    %c0_15 = arith.constant 0 : index
    %c0_16 = arith.constant 0 : index
    %27 = vector.load %arg5[%c0_14, %c0_15, %c0_16] : memref<1x64x64xf32, #tpu.memory_space<vmem>>, vector<1x64x64xf32>
    %28 = vector.shape_cast %27 : vector<1x64x64xf32> to vector<64x64xf32>
    %29 = vector.shape_cast %26 : vector<64x64xf32> to vector<1x64x64xf32>
    tpu.vector_store %arg5[%c0_14, %c0_15, %c0_16], %29 {strides = array<i32>} : memref<1x64x64xf32, #tpu.memory_space<vmem>>, vector<1x64x64xf32>,
    return
  }
  func.func @transform_0(%arg0: i32) -> (i32, i32, i32) {
    %c0_i32 = arith.constant 0 : i32
    %c0_i32_0 = arith.constant 0 : i32
    %c0_i32_1 = arith.constant 0 : i32
    return %arg0, %c0_i32, %c0_i32_0 : i32, i32, i32
  }
  func.func @transform_1(%arg0: i32) -> (i32, i32) {
    %c0_i32 = arith.constant 0 : i32
    %c0_i32_0 = arith.constant 0 : i32
    %c0_i32_1 = arith.constant 0 : i32
    return %c0_i32, %c0_i32_0 : i32, i32
  }
  func.func @transform_2(%arg0: i32) -> (i32, i32) {
    %c0_i32 = arith.constant 0 : i32
    %c0_i32_0 = arith.constant 0 : i32
    %c0_i32_1 = arith.constant 0 : i32
    return %c0_i32, %c0_i32_0 : i32, i32
  }
  func.func @transform_3(%arg0: i32) -> (i32, i32) {
    %c0_i32 = arith.constant 0 : i32
    %c0_i32_0 = arith.constant 0 : i32
    %c0_i32_1 = arith.constant 0 : i32
    return %c0_i32, %c0_i32_0 : i32, i32
  }
  func.func @transform_4(%arg0: i32) -> (i32, i32, i32) {
    %c0_i32 = arith.constant 0 : i32
    %c0_i32_0 = arith.constant 0 : i32
    %c0_i32_1 = arith.constant 0 : i32
    return %arg0, %c0_i32, %c0_i32_0 : i32, i32, i32
  }
}

module attributes {stable_mosaic.version = 11 : i64} {
  func.func @_matmul_bias_kernel(%arg0: i32, %arg1: i32, %arg2: i32, %arg3: memref<128x128xbf16, #tpu.memory_space<vmem>>, %arg4: memref<128x128xbf16, #tpu.memory_space<vmem>>, %arg5: memref<1x128xf32, #tpu.memory_space<vmem>>, %arg6: memref<128x128xf32, #tpu.memory_space<vmem>>, %arg7: memref<128x128xf32, #tpu.memory_space<vmem>>) attributes {dimension_semantics = [#tpu.dimension_semantics<parallel>, #tpu.dimension_semantics<parallel>, #tpu.dimension_semantics<arbitrary>], iteration_bounds = array<i64: 1, 2, 1>, scalar_prefetch = 0 : i64, scratch_operands = 1 : i64, tpu.core_type = #tpu.core_type<tc>, window_params = [{transform_indices = @transform_0, window_bounds = array<i64: 128, 128>}, {transform_indices = @transform_1, window_bounds = array<i64: 128, 128>}, {transform_indices = @transform_2, window_bounds = array<i64: 1, 128>}, {transform_indices = @transform_3, window_bounds = array<i64: 128, 128>}]} {
    %c0_i32 = arith.constant 0 : i32
    %0 = arith.cmpi eq, %arg2, %c0_i32 : i32
    %1 = arith.extui %0 : i1 to i32
    %c0_i32_0 = arith.constant 0 : i32
    %2 = arith.cmpi ne, %1, %c0_i32_0 : i32
    scf.if %2 {
      %cst_10 = arith.constant 0.000000e+00 : f32
      %12 = vector.broadcast %cst_10 : f32 to vector<128x128xf32>
      %c0_11 = arith.constant 0 : index
      %c0_12 = arith.constant 0 : index
      %13 = vector.load %arg7[%c0_11, %c0_12] : memref<128x128xf32, #tpu.memory_space<vmem>>, vector<128x128xf32>
      tpu.vector_store %arg7[%c0_11, %c0_12], %12 {strides = array<i32>} : memref<128x128xf32, #tpu.memory_space<vmem>>, vector<128x128xf32>,
    } else {
    }
    %c0 = arith.constant 0 : index
    %c0_1 = arith.constant 0 : index
    %3 = vector.load %arg7[%c0, %c0_1] : memref<128x128xf32, #tpu.memory_space<vmem>>, vector<128x128xf32>
    %c0_2 = arith.constant 0 : index
    %c0_3 = arith.constant 0 : index
    %4 = vector.load %arg3[%c0_2, %c0_3] : memref<128x128xbf16, #tpu.memory_space<vmem>>, vector<128x128xbf16>
    %c0_4 = arith.constant 0 : index
    %c0_5 = arith.constant 0 : index
    %5 = vector.load %arg4[%c0_4, %c0_5] : memref<128x128xbf16, #tpu.memory_space<vmem>>, vector<128x128xbf16>
    %cst = arith.constant dense<0.000000e+00> : vector<128x128xf32>
    %6 = tpu.matmul %4, %5, %cst {dimension_numbers = #tpu.dot_dimension_numbers<[1], [0], [0], [1], [0, 0, 1, 1], [], []>} : vector<128x128xbf16>, vector<128x128xbf16>, vector<128x128xf32> -> vector<128x128xf32>
    %7 = arith.addf %3, %6 : vector<128x128xf32>
    %c0_6 = arith.constant 0 : index
    %c0_7 = arith.constant 0 : index
    %8 = vector.load %arg7[%c0_6, %c0_7] : memref<128x128xf32, #tpu.memory_space<vmem>>, vector<128x128xf32>
    tpu.vector_store %arg7[%c0_6, %c0_7], %7 {strides = array<i32>} : memref<128x128xf32, #tpu.memory_space<vmem>>, vector<128x128xf32>,
    %c0_i32_8 = arith.constant 0 : i32
    %9 = arith.cmpi eq, %arg2, %c0_i32_8 : i32
    %10 = arith.extui %9 : i1 to i32
    %c0_i32_9 = arith.constant 0 : i32
    %11 = arith.cmpi ne, %10, %c0_i32_9 : i32
    scf.if %11 {
      %c0_10 = arith.constant 0 : index
      %c0_11 = arith.constant 0 : index
      %12 = vector.load %arg7[%c0_10, %c0_11] : memref<128x128xf32, #tpu.memory_space<vmem>>, vector<128x128xf32>
      %c0_12 = arith.constant 0 : index
      %c0_13 = arith.constant 0 : index
      %13 = vector.load %arg5[%c0_12, %c0_13] : memref<1x128xf32, #tpu.memory_space<vmem>>, vector<1x128xf32>
      %14 = vector.broadcast %13 : vector<1x128xf32> to vector<128x128xf32>
      %15 = arith.addf %12, %14 : vector<128x128xf32>
      %c0_14 = arith.constant 0 : index
      %c0_15 = arith.constant 0 : index
      %16 = vector.load %arg6[%c0_14, %c0_15] : memref<128x128xf32, #tpu.memory_space<vmem>>, vector<128x128xf32>
      tpu.vector_store %arg6[%c0_14, %c0_15], %15 {strides = array<i32>} : memref<128x128xf32, #tpu.memory_space<vmem>>, vector<128x128xf32>,
    } else {
    }
    return
  }
  func.func @transform_0(%arg0: i32, %arg1: i32, %arg2: i32) -> (i32, i32) {
    %c0_i32 = arith.constant 0 : i32
    return %arg0, %arg2 : i32, i32
  }
  func.func @transform_1(%arg0: i32, %arg1: i32, %arg2: i32) -> (i32, i32) {
    %c0_i32 = arith.constant 0 : i32
    return %arg2, %arg1 : i32, i32
  }
  func.func @transform_2(%arg0: i32, %arg1: i32, %arg2: i32) -> (i32, i32) {
    %c0_i32 = arith.constant 0 : i32
    %c0_i32_0 = arith.constant 0 : i32
    return %c0_i32, %arg1 : i32, i32
  }
  func.func @transform_3(%arg0: i32, %arg1: i32, %arg2: i32) -> (i32, i32) {
    %c0_i32 = arith.constant 0 : i32
    return %arg0, %arg1 : i32, i32
  }
}

module attributes {stable_mosaic.version = 11 : i64} {
  func.func @_attn_kernel(%arg0: i32, %arg1: memref<1x64x64xbf16, #tpu.memory_space<vmem>>, %arg2: memref<1x64x64xbf16, #tpu.memory_space<vmem>>, %arg3: memref<1x64x64xbf16, #tpu.memory_space<vmem>>, %arg4: memref<1x64x64xf32, #tpu.memory_space<vmem>>) attributes {dimension_semantics = [#tpu.dimension_semantics<parallel>], iteration_bounds = array<i64: 2>, scalar_prefetch = 0 : i64, scratch_operands = 0 : i64, tpu.core_type = #tpu.core_type<tc>, window_params = [{transform_indices = @transform_0, window_bounds = array<i64: 1, 64, 64>}, {transform_indices = @transform_1, window_bounds = array<i64: 1, 64, 64>}, {transform_indices = @transform_2, window_bounds = array<i64: 1, 64, 64>}, {transform_indices = @transform_3, window_bounds = array<i64: 1, 64, 64>}]} {
    %c0 = arith.constant 0 : index
    %c0_0 = arith.constant 0 : index
    %c0_1 = arith.constant 0 : index
    %0 = vector.load %arg1[%c0, %c0_0, %c0_1] : memref<1x64x64xbf16, #tpu.memory_space<vmem>>, vector<1x64x64xbf16>
    %1 = vector.shape_cast %0 : vector<1x64x64xbf16> to vector<64x64xbf16>
    %c0_2 = arith.constant 0 : index
    %c0_3 = arith.constant 0 : index
    %c0_4 = arith.constant 0 : index
    %2 = vector.load %arg2[%c0_2, %c0_3, %c0_4] : memref<1x64x64xbf16, #tpu.memory_space<vmem>>, vector<1x64x64xbf16>
    %3 = vector.shape_cast %2 : vector<1x64x64xbf16> to vector<64x64xbf16>
    %c0_5 = arith.constant 0 : index
    %c0_6 = arith.constant 0 : index
    %c0_7 = arith.constant 0 : index
    %4 = vector.load %arg3[%c0_5, %c0_6, %c0_7] : memref<1x64x64xbf16, #tpu.memory_space<vmem>>, vector<1x64x64xbf16>
    %5 = vector.shape_cast %4 : vector<1x64x64xbf16> to vector<64x64xbf16>
    %cst = arith.constant dense<0.000000e+00> : vector<64x64xf32>
    %6 = tpu.matmul %1, %3, %cst {dimension_numbers = #tpu.dot_dimension_numbers<[1], [1], [0], [0], [0, 0, 1, 0], [], []>} : vector<64x64xbf16>, vector<64x64xbf16>, vector<64x64xf32> -> vector<64x64xf32>
    %cst_8 = arith.constant dense<0xFF800000> : vector<64xf32>
    %7 = vector.multi_reduction <maximumf>, %6, %cst_8 [1] : vector<64x64xf32> to vector<64xf32>
    %8 = vector.shape_cast %7 : vector<64xf32> to vector<64x1xf32>
    %9 = vector.broadcast %8 : vector<64x1xf32> to vector<64x64xf32>
    %10 = arith.subf %6, %9 : vector<64x64xf32>
    %11 = math.exp %10 : vector<64x64xf32>
    %cst_9 = arith.constant dense<0.000000e+00> : vector<64xf32>
    %12 = vector.multi_reduction <add>, %11, %cst_9 [1] : vector<64x64xf32> to vector<64xf32>
    %13 = vector.shape_cast %12 : vector<64xf32> to vector<64x1xf32>
    %14 = tpu.reciprocal %13 {approx = true} : vector<64x1xf32> -> vector<64x1xf32>
    %15 = vector.broadcast %14 : vector<64x1xf32> to vector<64x64xf32>
    %16 = arith.mulf %11, %15 : vector<64x64xf32>
    %17 = arith.truncf %16 : vector<64x64xf32> to vector<64x64xbf16>
    %cst_10 = arith.constant dense<0.000000e+00> : vector<64x64xf32>
    %18 = tpu.matmul %17, %5, %cst_10 {dimension_numbers = #tpu.dot_dimension_numbers<[1], [0], [0], [1], [0, 0, 1, 1], [], []>} : vector<64x64xbf16>, vector<64x64xbf16>, vector<64x64xf32> -> vector<64x64xf32>
    %c0_11 = arith.constant 0 : index
    %c0_12 = arith.constant 0 : index
    %c0_13 = arith.constant 0 : index
    %19 = vector.load %arg4[%c0_11, %c0_12, %c0_13] : memref<1x64x64xf32, #tpu.memory_space<vmem>>, vector<1x64x64xf32>
    %20 = vector.shape_cast %19 : vector<1x64x64xf32> to vector<64x64xf32>
    %21 = vector.shape_cast %18 : vector<64x64xf32> to vector<1x64x64xf32>
    tpu.vector_store %arg4[%c0_11, %c0_12, %c0_13], %21 {strides = array<i32>} : memref<1x64x64xf32, #tpu.memory_space<vmem>>, vector<1x64x64xf32>,
    return
  }
  func.func @transform_0(%arg0: i32) -> (i32, i32, i32) {
    %c0_i32 = arith.constant 0 : i32
    %c0_i32_0 = arith.constant 0 : i32
    %c0_i32_1 = arith.constant 0 : i32
    return %arg0, %c0_i32, %c0_i32_0 : i32, i32, i32
  }
  func.func @transform_1(%arg0: i32) -> (i32, i32, i32) {
    %c0_i32 = arith.constant 0 : i32
    %c0_i32_0 = arith.constant 0 : i32
    %c0_i32_1 = arith.constant 0 : i32
    return %arg0, %c0_i32, %c0_i32_0 : i32, i32, i32
  }
  func.func @transform_2(%arg0: i32) -> (i32, i32, i32) {
    %c0_i32 = arith.constant 0 : i32
    %c0_i32_0 = arith.constant 0 : i32
    %c0_i32_1 = arith.constant 0 : i32
    return %arg0, %c0_i32, %c0_i32_0 : i32, i32, i32
  }
  func.func @transform_3(%arg0: i32) -> (i32, i32, i32) {
    %c0_i32 = arith.constant 0 : i32
    %c0_i32_0 = arith.constant 0 : i32
    %c0_i32_1 = arith.constant 0 : i32
    return %arg0, %c0_i32, %c0_i32_0 : i32, i32, i32
  }
}

module attributes {stable_mosaic.version = 11 : i64} {
  func.func @_matmul_bias_res_kernel(%arg0: i32, %arg1: i32, %arg2: i32, %arg3: memref<128x128xbf16, #tpu.memory_space<vmem>>, %arg4: memref<128x128xbf16, #tpu.memory_space<vmem>>, %arg5: memref<1x128xf32, #tpu.memory_space<vmem>>, %arg6: memref<128x128xf32, #tpu.memory_space<vmem>>, %arg7: memref<128x128xf32, #tpu.memory_space<vmem>>, %arg8: memref<128x128xf32, #tpu.memory_space<vmem>>) attributes {dimension_semantics = [#tpu.dimension_semantics<parallel>, #tpu.dimension_semantics<parallel>, #tpu.dimension_semantics<arbitrary>], iteration_bounds = array<i64: 1, 1, 1>, scalar_prefetch = 0 : i64, scratch_operands = 1 : i64, tpu.core_type = #tpu.core_type<tc>, window_params = [{transform_indices = @transform_0, window_bounds = array<i64: 128, 128>}, {transform_indices = @transform_1, window_bounds = array<i64: 128, 128>}, {transform_indices = @transform_2, window_bounds = array<i64: 1, 128>}, {transform_indices = @transform_3, window_bounds = array<i64: 128, 128>}, {transform_indices = @transform_4, window_bounds = array<i64: 128, 128>}]} {
    %c0_i32 = arith.constant 0 : i32
    %0 = arith.cmpi eq, %arg2, %c0_i32 : i32
    %1 = arith.extui %0 : i1 to i32
    %c0_i32_0 = arith.constant 0 : i32
    %2 = arith.cmpi ne, %1, %c0_i32_0 : i32
    scf.if %2 {
      %cst_10 = arith.constant 0.000000e+00 : f32
      %12 = vector.broadcast %cst_10 : f32 to vector<128x128xf32>
      %c0_11 = arith.constant 0 : index
      %c0_12 = arith.constant 0 : index
      %13 = vector.load %arg8[%c0_11, %c0_12] : memref<128x128xf32, #tpu.memory_space<vmem>>, vector<128x128xf32>
      tpu.vector_store %arg8[%c0_11, %c0_12], %12 {strides = array<i32>} : memref<128x128xf32, #tpu.memory_space<vmem>>, vector<128x128xf32>,
    } else {
    }
    %c0 = arith.constant 0 : index
    %c0_1 = arith.constant 0 : index
    %3 = vector.load %arg8[%c0, %c0_1] : memref<128x128xf32, #tpu.memory_space<vmem>>, vector<128x128xf32>
    %c0_2 = arith.constant 0 : index
    %c0_3 = arith.constant 0 : index
    %4 = vector.load %arg3[%c0_2, %c0_3] : memref<128x128xbf16, #tpu.memory_space<vmem>>, vector<128x128xbf16>
    %c0_4 = arith.constant 0 : index
    %c0_5 = arith.constant 0 : index
    %5 = vector.load %arg4[%c0_4, %c0_5] : memref<128x128xbf16, #tpu.memory_space<vmem>>, vector<128x128xbf16>
    %cst = arith.constant dense<0.000000e+00> : vector<128x128xf32>
    %6 = tpu.matmul %4, %5, %cst {dimension_numbers = #tpu.dot_dimension_numbers<[1], [0], [0], [1], [0, 0, 1, 1], [], []>} : vector<128x128xbf16>, vector<128x128xbf16>, vector<128x128xf32> -> vector<128x128xf32>
    %7 = arith.addf %3, %6 : vector<128x128xf32>
    %c0_6 = arith.constant 0 : index
    %c0_7 = arith.constant 0 : index
    %8 = vector.load %arg8[%c0_6, %c0_7] : memref<128x128xf32, #tpu.memory_space<vmem>>, vector<128x128xf32>
    tpu.vector_store %arg8[%c0_6, %c0_7], %7 {strides = array<i32>} : memref<128x128xf32, #tpu.memory_space<vmem>>, vector<128x128xf32>,
    %c0_i32_8 = arith.constant 0 : i32
    %9 = arith.cmpi eq, %arg2, %c0_i32_8 : i32
    %10 = arith.extui %9 : i1 to i32
    %c0_i32_9 = arith.constant 0 : i32
    %11 = arith.cmpi ne, %10, %c0_i32_9 : i32
    scf.if %11 {
      %c0_10 = arith.constant 0 : index
      %c0_11 = arith.constant 0 : index
      %12 = vector.load %arg8[%c0_10, %c0_11] : memref<128x128xf32, #tpu.memory_space<vmem>>, vector<128x128xf32>
      %c0_12 = arith.constant 0 : index
      %c0_13 = arith.constant 0 : index
      %13 = vector.load %arg5[%c0_12, %c0_13] : memref<1x128xf32, #tpu.memory_space<vmem>>, vector<1x128xf32>
      %14 = vector.broadcast %13 : vector<1x128xf32> to vector<128x128xf32>
      %15 = arith.addf %12, %14 : vector<128x128xf32>
      %c0_14 = arith.constant 0 : index
      %c0_15 = arith.constant 0 : index
      %16 = vector.load %arg6[%c0_14, %c0_15] : memref<128x128xf32, #tpu.memory_space<vmem>>, vector<128x128xf32>
      %17 = arith.addf %15, %16 : vector<128x128xf32>
      %c0_16 = arith.constant 0 : index
      %c0_17 = arith.constant 0 : index
      %18 = vector.load %arg7[%c0_16, %c0_17] : memref<128x128xf32, #tpu.memory_space<vmem>>, vector<128x128xf32>
      tpu.vector_store %arg7[%c0_16, %c0_17], %17 {strides = array<i32>} : memref<128x128xf32, #tpu.memory_space<vmem>>, vector<128x128xf32>,
    } else {
    }
    return
  }
  func.func @transform_0(%arg0: i32, %arg1: i32, %arg2: i32) -> (i32, i32) {
    %c0_i32 = arith.constant 0 : i32
    return %arg0, %arg2 : i32, i32
  }
  func.func @transform_1(%arg0: i32, %arg1: i32, %arg2: i32) -> (i32, i32) {
    %c0_i32 = arith.constant 0 : i32
    return %arg2, %arg1 : i32, i32
  }
  func.func @transform_2(%arg0: i32, %arg1: i32, %arg2: i32) -> (i32, i32) {
    %c0_i32 = arith.constant 0 : i32
    %c0_i32_0 = arith.constant 0 : i32
    return %c0_i32, %arg1 : i32, i32
  }
  func.func @transform_3(%arg0: i32, %arg1: i32, %arg2: i32) -> (i32, i32) {
    %c0_i32 = arith.constant 0 : i32
    return %arg0, %arg1 : i32, i32
  }
  func.func @transform_4(%arg0: i32, %arg1: i32, %arg2: i32) -> (i32, i32) {
    %c0_i32 = arith.constant 0 : i32
    return %arg0, %arg1 : i32, i32
  }
}

</mosaic_0001>

<llo_original>
// kernel: attn_block_forward.4
$region0: #{attn_block_forward.4}
  #allocation0 [shape = 'u32[]', space=smem, size = 0x4, offset = 0x4, fixed_abs, tag = 'smem constant byte address 0x4 - core index']
  #allocation1 [shape = 'u32[72,128]{1,0:T(1,128)}', space=vmem, size = 0x9000, scoped, tag = 'internal scratch']
  %s0 = inlined_call_operand.hbm [shape: f32[2,64,64], index: 0, kind: input, shape index: {}]
  %s1 = inlined_call_operand.vmem [shape: f32[1,64], index: 1, kind: input, shape index: {}]
  %s2 = inlined_call_operand.vmem [shape: f32[1,64], index: 2, kind: input, shape index: {}]
  %s3 = inlined_call_operand.vmem [shape: f32[64,64], index: 3, kind: input, shape index: {}]
  %s4 = inlined_call_operand.vmem [shape: f32[2,64,64], index: 4, kind: output, shape index: {}]
  %s5 = sld [smem:[#allocation0]]
  $region53: #{attn_block_forward.4} parent=0
    _
  %s7 = ssub.s32 1, %s5
  %s8 = scalar_select 0, %s7, %s5
  $region1: #{attn_block_forward.4} parent=0
    #allocation2 [shape = 'u8[65536]{0}', space=vmem, size = 0x10000, scoped, tag = 'input window, operand 0']
    #allocation3 [shape = 's32[2]{0}', space=sflag, size = 0x8, scoped, tag = 'scoped memory for attn_block_forward.4']
    %9 = vsyncpa [#allocation3], 0
    %s10 = scalar_lea.sflag [#allocation3], 1
    %11 = vsyncpa %s10, 0
    loop: start=0, step=1, limit=4
    $region2: #{attn_block_forward.4} parent=1 // loop_pre_header
      _
    $region3: #{attn_block_forward.4} parent=1 // loop_header
      %s13 = sphi 0, %s17
      %p14 = scmp.ge.s32.totalorder %s13, 4
      %s23 = sphi 0, %s25
      %s26 = sphi 0, %s23
      %s27 = sphi 0, %s26
      %s43 = sphi 0, %s27
      %s47 = sphi 0, %s47
      %s49 = sphi 0, %s47
      %s50 = sphi 0, %s49
      %s64 = sphi 0, %s50
      %s68 = sphi 0, %s68
      %s70 = sphi 0, %s68
      %s71 = sphi 0, %s70
      %s85 = sphi 0, %s71
      %s89 = sphi 0, %s89
      %s91 = sphi 0, %s89
      %s92 = sphi 0, %s91
      %s106 = sphi 0, %s92
      %s112 = sphi 0, %s114
      %s115 = sphi 0, %s112
      %s116 = sphi 0, %s115
      %s132 = sphi 0, %s116
    $region4: #{attn_block_forward.4} parent=1 // loop_header_branch
      %16 = sbr.rel (%p14) target = $region8
    $region5: #{attn_block_forward.4} parent=1 // loop_body
      %s18 = ssub.s32 %s13, 1
      %s19 = ssub.s32 %s13, 2
      %s20 = sadd.s32 %s13, 1
      %s21 = ssub.s32 %s13, %s20
      %p22 = scmp.eq.s32.totalorder %s21, 0
      %s24 = sadd.s32 %s23, 1
      %s25 = scalar_select %p22, %s23, %s24
      %p28 = pneg %p22
      %p29 = scmp.eq.s32.totalorder %s13, 1
      %p30 = por %p28, %p29
      %p31 = scmp.ne.s32.totalorder %s23, %s26
      %p32 = scmp.eq.s32.totalorder %s13, 0
      %p33 = por %p31, %p32
      %p34 = scmp.ne.s32.totalorder %s23, %s26
      %p35 = scmp.eq.s32.totalorder %s18, 1
      %p36 = por %p34, %p35
      %p37 = scmp.ne.s32.totalorder %s26, %s27
      %p38 = scmp.eq.s32.totalorder %s18, 0
      %p39 = por %p37, %p38
      %p40 = scmp.ne.s32.totalorder %s26, %s27
      %p41 = scmp.eq.s32.totalorder %s19, 1
      %p42 = por %p40, %p41
      %p44 = scmp.ne.s32.totalorder %s27, %s43
      %p45 = scmp.eq.s32.totalorder %s19, 0
      %p46 = por %p44, %p45
      %s48 = sadd.s32 %s47, 1
      %p51 = scmp.eq.s32.totalorder %s13, 1
      %p52 = scmp.ne.s32.totalorder %s47, %s49
      %p53 = scmp.eq.s32.totalorder %s13, 0
      %p54 = por %p52, %p53
      %p55 = scmp.ne.s32.totalorder %s47, %s49
      %p56 = scmp.eq.s32.totalorder %s18, 1
      %p57 = por %p55, %p56
      %p58 = scmp.ne.s32.totalorder %s49, %s50
      %p59 = scmp.eq.s32.totalorder %s18, 0
      %p60 = por %p58, %p59
      %p61 = scmp.ne.s32.totalorder %s49, %s50
      %p62 = scmp.eq.s32.totalorder %s19, 1
      %p63 = por %p61, %p62
      %p65 = scmp.ne.s32.totalorder %s50, %s64
      %p66 = scmp.eq.s32.totalorder %s19, 0
      %p67 = por %p65, %p66
      %s69 = sadd.s32 %s68, 1
      %p72 = scmp.eq.s32.totalorder %s13, 1
      %p73 = scmp.ne.s32.totalorder %s68, %s70
      %p74 = scmp.eq.s32.totalorder %s13, 0
      %p75 = por %p73, %p74
      %p76 = scmp.ne.s32.totalorder %s68, %s70
      %p77 = scmp.eq.s32.totalorder %s18, 1
      %p78 = por %p76, %p77
      %p79 = scmp.ne.s32.totalorder %s70, %s71
      %p80 = scmp.eq.s32.totalorder %s18, 0
      %p81 = por %p79, %p80
      %p82 = scmp.ne.s32.totalorder %s70, %s71
      %p83 = scmp.eq.s32.totalorder %s19, 1
      %p84 = por %p82, %p83
      %p86 = scmp.ne.s32.totalorder %s71, %s85
      %p87 = scmp.eq.s32.totalorder %s19, 0
      %p88 = por %p86, %p87
      %s90 = sadd.s32 %s89, 1
      %p93 = scmp.eq.s32.totalorder %s13, 1
      %p94 = scmp.ne.s32.totalorder %s89, %s91
      %p95 = scmp.eq.s32.totalorder %s13, 0
      %p96 = por %p94, %p95
      %p97 = scmp.ne.s32.totalorder %s89, %s91
      %p98 = scmp.eq.s32.totalorder %s18, 1
      %p99 = por %p97, %p98
      %p100 = scmp.ne.s32.totalorder %s91, %s92
      %p101 = scmp.eq.s32.totalorder %s18, 0
      %p102 = por %p100, %p101
      %p103 = scmp.ne.s32.totalorder %s91, %s92
      %p104 = scmp.eq.s32.totalorder %s19, 1
      %p105 = por %p103, %p104
      %p107 = scmp.ne.s32.totalorder %s92, %s106
      %p108 = scmp.eq.s32.totalorder %s19, 0
      %p109 = por %p107, %p108
      %s110 = ssub.s32 %s13, %s20
      %p111 = scmp.eq.s32.totalorder %s110, 0
      %s113 = sadd.s32 %s112, 1
      %s114 = scalar_select %p111, %s112, %s113
      %p117 = pneg %p111
      %p118 = scmp.eq.s32.totalorder %s13, 1
      %p119 = por %p117, %p118
      %p120 = scmp.ne.s32.totalorder %s112, %s115
      %p121 = scmp.eq.s32.totalorder %s13, 0
      %p122 = por %p120, %p121
      %p123 = scmp.ne.s32.totalorder %s112, %s115
      %p124 = scmp.eq.s32.totalorder %s18, 1
      %p125 = por %p123, %p124
      %p126 = scmp.ne.s32.totalorder %s115, %s116
      %p127 = scmp.eq.s32.totalorder %s18, 0
      %p128 = por %p126, %p127
      %p129 = scmp.ne.s32.totalorder %s115, %s116
      %p130 = scmp.eq.s32.totalorder %s19, 1
      %p131 = por %p129, %p130
      %p133 = scmp.ne.s32.totalorder %s116, %s132
      %p134 = scmp.eq.s32.totalorder %s19, 0
      %p135 = por %p133, %p134
      %p136 = scmp.le.s32.totalorder 1, %s13
      %p137 = scmp.lt.s32.totalorder %s13, 3
      %p138 = pnand %p136, %p137
      %p139 = pneg %p138
      // Predicated region
      $region9: #{attn_block_forward.4} parent=5 // pred_check
        _
      $region10: #{attn_block_forward.4} parent=5 // pred_check_branch
        %141 = sbr.rel (%p138) target = $region12
      $region11: #{attn_block_forward.4} parent=5 // pred_region
        %s142 = ssub.s32 %s13, 1
        // Predicated region
        $region13: #{attn_block_forward.4} parent=11 // pred_check
          %p143 = pneg %p60
        $region14: #{attn_block_forward.4} parent=11 // pred_check_branch
          %145 = sbr.rel (%p143) target = $region16
        $region15: #{attn_block_forward.4} parent=11 // pred_region
          _
        $region16: #{attn_block_forward.4} parent=11 // pred_fallthru
          _
        // Predicated region
        $region17: #{attn_block_forward.4} parent=11 // pred_check
          %p146 = pneg %p81
        $region18: #{attn_block_forward.4} parent=11 // pred_check_branch
          %148 = sbr.rel (%p146) target = $region20
        $region19: #{attn_block_forward.4} parent=11 // pred_region
          _
        $region20: #{attn_block_forward.4} parent=11 // pred_fallthru
          _
        // Predicated region
        $region21: #{attn_block_forward.4} parent=11 // pred_check
          %p149 = pneg %p102
        $region22: #{attn_block_forward.4} parent=11 // pred_check_branch
          %151 = sbr.rel (%p149) target = $region24
        $region23: #{attn_block_forward.4} parent=11 // pred_region
          _
        $region24: #{attn_block_forward.4} parent=11 // pred_fallthru
          _
      $region12: #{attn_block_forward.4} parent=5 // pred_fallthru
        _
      %p152 = scmp.lt.s32.totalorder %s13, 2
      // Predicated region
      $region25: #{attn_block_forward.4} parent=5 // pred_check
        %p153 = pneg %p152
      $region26: #{attn_block_forward.4} parent=5 // pred_check_branch
        %155 = sbr.rel (%p153) target = $region28
      $region27: #{attn_block_forward.4} parent=5 // pred_region
        // Predicated region
        $region29: #{attn_block_forward.4} parent=27 // pred_check
          %p156 = pneg %p33
        $region30: #{attn_block_forward.4} parent=27 // pred_check_branch
          %158 = sbr.rel (%p156) target = $region32
        $region31: #{attn_block_forward.4} parent=27 // pred_region
          %s159 = sand.u32 %s23, 1
          %s160 = scalar_lea.sflag [#allocation3], %s159
          %s161 = sand.u32 %s23, 1
          %s162 = smul.addr %s161, 64
          %s163 = scalar_lea.vmem [#allocation2], %s162
          %165 = vsyncadd %s160, 0
          %s166 = smul.addr %s13, 8
          %s167 = smul.addr %s166, 8
          %s168 = scalar_lea.hbm %s0, %s167
          %s169 = sshll.u32 %s168, 4
          %s170 = int_to_ptr.hbm [resolvable:$true] %s169
          %s171 = sshll.u32 %s163, 4
          %s172 = int_to_ptr.vmem [resolvable:$true] %s171
          %177 = dma.hbm_to_vmem [thread:$0]  %s170, 1024, %s172, %s160, 128, 128, 8
        $region32: #{attn_block_forward.4} parent=27 // pred_fallthru
          _
      $region28: #{attn_block_forward.4} parent=5 // pred_fallthru
        _
      %p178 = scmp.le.s32.totalorder 1, %s13
      %p179 = scmp.lt.s32.totalorder %s13, 3
      %p180 = pnand %p178, %p179
      %p181 = pneg %p180
      // Predicated region
      $region33: #{attn_block_forward.4} parent=5 // pred_check
        _
      $region34: #{attn_block_forward.4} parent=5 // pred_check_branch
        %183 = sbr.rel (%p180) target = $region36
      $region35: #{attn_block_forward.4} parent=5 // pred_region
        %s184 = ssub.s32 %s13, 1
        %s185 = sand.u32 %s26, 1
        %s186 = scalar_lea.sflag [#allocation3], %s185
        %s187 = sand.u32 %s26, 1
        %s188 = smul.addr %s187, 64
        %s189 = scalar_lea.vmem [#allocation2], %s188
        // Predicated region
        $region37: #{attn_block_forward.4} parent=35 // pred_check
          %p190 = pneg %p39
        $region38: #{attn_block_forward.4} parent=35 // pred_check_branch
          %192 = sbr.rel (%p190) target = $region40
        $region39: #{attn_block_forward.4} parent=35 // pred_region
          %194 = dma.done %s186, 1024
        $region40: #{attn_block_forward.4} parent=35 // pred_fallthru
          _
        %s195 = sand.u32 %s26, 1
        %s196 = scalar_lea.sflag [#allocation3], %s195
        %s197 = sand.u32 %s26, 1
        %s198 = smul.addr %s197, 64
        %s199 = scalar_lea.vmem [#allocation2], %s198
        %p200 = pneg %p39
        %p201 = pneg %p36
        %p202 = pneg %p60
        %p203 = pneg %p57
        %p204 = pneg %p81
        %p205 = pneg %p78
        %p206 = pneg %p102
        %p207 = pneg %p99
        %p208 = pneg %p128
        %p209 = pneg %p125
        %p210 = scmp.lt.s32.totalorder %s18, 1
        %s211 = scalar_select %p210, %s18, 1
        %s212 = smul.addr %s211, 8
        %s213 = smul.addr %s212, 8
        %s214 = scalar_lea.vmem %s4, %s213
        %p215 = scmp.lt.s32.totalorder %s18, 1
        %s216 = scalar_select %p215, %s18, 1
        %s217 = smul.addr %s216, 8
        %s218 = smul.addr %s217, 8
        %s219 = scalar_lea.vmem %s4, %s218
        %v220 = vld [vmem:[%s189] sm:$0xff]
        %v221 = vld [vmem:[%s189 + $0x8] sm:$0xff]
        %v222 = vld [vmem:[%s189 + $0x10] sm:$0xff]
        %v223 = vld [vmem:[%s189 + $0x18] sm:$0xff]
        %v224 = vld [vmem:[%s189 + $0x20] sm:$0xff]
        %v225 = vld [vmem:[%s189 + $0x28] sm:$0xff]
        %v226 = vld [vmem:[%s189 + $0x30] sm:$0xff]
        %v227 = vld [vmem:[%s189 + $0x38] sm:$0xff]
        %v228 = vld [vmem:[%s3] sm:$0xff]
        %v229 = vld [vmem:[%s3 + $0x8] sm:$0xff]
        %v230 = vld [vmem:[%s3 + $0x10] sm:$0xff]
        %v231 = vld [vmem:[%s3 + $0x18] sm:$0xff]
        %v232 = vld [vmem:[%s3 + $0x20] sm:$0xff]
        %v233 = vld [vmem:[%s3 + $0x28] sm:$0xff]
        %v234 = vld [vmem:[%s3 + $0x30] sm:$0xff]
        %v235 = vld [vmem:[%s3 + $0x38] sm:$0xff]
        %vm236 = vcmask 523264
        %v237 = vsel %vm236, %v220, 0.0
        %v238 = vsel %vm236, %v221, 0.0
        %v239 = vadd.f32 %v237, %v238
        %v240 = vsel %vm236, %v222, 0.0
        %v241 = vadd.f32 %v239, %v240
        %v242 = vsel %vm236, %v223, 0.0
        %v243 = vadd.f32 %v241, %v242
        %v244 = vsel %vm236, %v224, 0.0
        %v245 = vadd.f32 %v243, %v244
        %v246 = vsel %vm236, %v225, 0.0
        %v247 = vadd.f32 %v245, %v246
        %v248 = vsel %vm236, %v226, 0.0
        %v249 = vadd.f32 %v247, %v248
        %v250 = vsel %vm236, %v227, 0.0
        %v251 = vadd.f32 %v249, %v250
        %v252 = vrot.slane %v251, 4
        %v253 = vadd.f32 %v251, %v252
        %v254 = vrot.slane %v253, 2
        %v255 = vadd.f32 %v253, %v254
        %v256 = vrot.slane %v255, 1
        %v257 = vadd.f32 %v255, %v256
        %v258 = vmul.f32 %v257, 0.015625
        %v260 = vsel %vm236, %v258, 0
        %262 = vmatpush.msra.mxu0 0.0
        %263 = vmatpush.msra.mxu0 0.0
        %264 = vmatpush.msra.mxu0 0.0
        %265 = vmatpush.msra.mxu0 0.0
        %266 = vmatpush.msra.mxu0 0.0
        %267 = vmatpush.msra.mxu0 0.0
        %268 = vmatpush.msra.mxu0 0.0
        %269 = vmatpush.msra.mxu0 0.0
        %270 = vmatpush.msra.mxu0 %v235
        %271 = vmatpush.msra.mxu0 %v234
        %272 = vmatpush.msra.mxu0 %v233
        %273 = vmatpush.msra.mxu0 %v232
        %274 = vmatpush.msra.mxu0 %v231
        %275 = vmatpush.msra.mxu0 %v230
        %276 = vmatpush.msra.mxu0 %v229
        %277 = vmatpush.msra.mxu0 %v228
        %278 = vmatmul.f32.gmra.mxu0 %v260
        %v279 = vpop.f32.mrf.mxu0
        %v280 = vadd.f32 0.0, %v279
        %281 = vdwg.mxu0
        %v282 = vperm.slane %v280, 0
        %v283 = vsub.f32 %v220, %v282
        %v284 = vsub.f32 %v221, %v282
        %v285 = vsub.f32 %v222, %v282
        %v286 = vsub.f32 %v223, %v282
        %v287 = vsub.f32 %v224, %v282
        %v288 = vsub.f32 %v225, %v282
        %v289 = vsub.f32 %v226, %v282
        %v290 = vsub.f32 %v227, %v282
        %v291 = vmul.f32 %v283, %v283
        %v292 = vmul.f32 %v284, %v284
        %v293 = vmul.f32 %v285, %v285
        %v294 = vmul.f32 %v286, %v286
        %v295 = vmul.f32 %v287, %v287
        %v296 = vmul.f32 %v288, %v288
        %v297 = vmul.f32 %v289, %v289
        %v298 = vmul.f32 %v290, %v290
        %v299 = vsel %vm236, %v291, 0.0
        %v300 = vsel %vm236, %v292, 0.0
        %v301 = vadd.f32 %v299, %v300
        %v302 = vsel %vm236, %v293, 0.0
        %v303 = vadd.f32 %v301, %v302
        %v304 = vsel %vm236, %v294, 0.0
        %v305 = vadd.f32 %v303, %v304
        %v306 = vsel %vm236, %v295, 0.0
        %v307 = vadd.f32 %v305, %v306
        %v308 = vsel %vm236, %v296, 0.0
        %v309 = vadd.f32 %v307, %v308
        %v310 = vsel %vm236, %v297, 0.0
        %v311 = vadd.f32 %v309, %v310
        %v312 = vsel %vm236, %v298, 0.0
        %v313 = vadd.f32 %v311, %v312
        %v314 = vrot.slane %v313, 4
        %v315 = vadd.f32 %v313, %v314
        %v316 = vrot.slane %v315, 2
        %v317 = vadd.f32 %v315, %v316
        %v318 = vrot.slane %v317, 1
        %v319 = vadd.f32 %v317, %v318
        %v320 = vmul.f32 %v319, 0.015625
        %v322 = vsel %vm236, %v320, 0
        %324 = vmatpush.msra.mxu0 0.0
        %325 = vmatpush.msra.mxu0 0.0
        %326 = vmatpush.msra.mxu0 0.0
        %327 = vmatpush.msra.mxu0 0.0
        %328 = vmatpush.msra.mxu0 0.0
        %329 = vmatpush.msra.mxu0 0.0
        %330 = vmatpush.msra.mxu0 0.0
        %331 = vmatpush.msra.mxu0 0.0
        %332 = vmatpush.msra.mxu0 %v235
        %333 = vmatpush.msra.mxu0 %v234
        %334 = vmatpush.msra.mxu0 %v233
        %335 = vmatpush.msra.mxu0 %v232
        %336 = vmatpush.msra.mxu0 %v231
        %337 = vmatpush.msra.mxu0 %v230
        %338 = vmatpush.msra.mxu0 %v229
        %339 = vmatpush.msra.mxu0 %v228
        %340 = vmatmul.f32.gmra.mxu0 %v322
        %v341 = vpop.f32.mrf.mxu0
        %v342 = vadd.f32 1e-06, %v341
        %343 = vdwg.mxu0
        %v344 = vrsqrt.pop %v342
        %v345 = vmul.f32 %v344, %v342
        %v346 = vmul.f32 %v345, %v344
        %v347 = vmul.f32 0.5, %v346
        %v348 = vsub.f32 1.5, %v347
        %v349 = vmul.f32 %v344, %v348
        %vm350 = vweird.f32 %v342
        %vm351 = vweird.f32 %v344
        %vm352 = vmor %vm350, %vm351
        %v353 = vsel %vm352, %v344, %v349
        %v354 = vperm.slane %v353, 0
        %v355 = vmul.f32 %v283, %v354
        %v356 = vmul.f32 %v284, %v354
        %v357 = vmul.f32 %v285, %v354
        %v358 = vmul.f32 %v286, %v354
        %v359 = vmul.f32 %v287, %v354
        %v360 = vmul.f32 %v288, %v354
        %v361 = vmul.f32 %v289, %v354
        %v362 = vmul.f32 %v290, %v354
        %v363 = vld [vmem:[%s1] sm:$0x1]
        %v365 = vperm.slane %v363, 0
        %v367 = vmul.f32 %v355, %v365
        %v368 = vmul.f32 %v356, %v365
        %v369 = vmul.f32 %v357, %v365
        %v370 = vmul.f32 %v358, %v365
        %v371 = vmul.f32 %v359, %v365
        %v372 = vmul.f32 %v360, %v365
        %v373 = vmul.f32 %v361, %v365
        %v374 = vmul.f32 %v362, %v365
        %v375 = vld [vmem:[%s2] sm:$0x1]
        %v377 = vperm.slane %v375, 0
        %v379 = vadd.f32 %v367, %v377
        %v380 = vadd.f32 %v368, %v377
        %v381 = vadd.f32 %v369, %v377
        %v382 = vadd.f32 %v370, %v377
        %v383 = vadd.f32 %v371, %v377
        %v384 = vadd.f32 %v372, %v377
        %v385 = vadd.f32 %v373, %v377
        %v386 = vadd.f32 %v374, %v377
        %387 = vst.msk [vmem:[%s219] sm:$0xff] %vm236, %v379
        %388 = vst.msk [vmem:[%s219 + $0x8] sm:$0xff] %vm236, %v380
        %389 = vst.msk [vmem:[%s219 + $0x10] sm:$0xff] %vm236, %v381
        %390 = vst.msk [vmem:[%s219 + $0x18] sm:$0xff] %vm236, %v382
        %391 = vst.msk [vmem:[%s219 + $0x20] sm:$0xff] %vm236, %v383
        %392 = vst.msk [vmem:[%s219 + $0x28] sm:$0xff] %vm236, %v384
        %393 = vst.msk [vmem:[%s219 + $0x30] sm:$0xff] %vm236, %v385
        %394 = vst.msk [vmem:[%s219 + $0x38] sm:$0xff] %vm236, %v386
        %p395 = scmp.lt.s32.totalorder %s18, 1
        %s396 = scalar_select %p395, %s18, 1
        %s397 = smul.addr %s396, 8
        %s398 = smul.addr %s397, 8
        %s399 = scalar_lea.vmem %s4, %s398
        // Predicated region
        $region41: #{attn_block_forward.4} parent=35 // pred_check
          %p400 = pneg %p125
        $region42: #{attn_block_forward.4} parent=35 // pred_check_branch
          %402 = sbr.rel (%p400) target = $region44
        $region43: #{attn_block_forward.4} parent=35 // pred_region
          _
        $region44: #{attn_block_forward.4} parent=35 // pred_fallthru
          _
      $region36: #{attn_block_forward.4} parent=5 // pred_fallthru
        _
      %p403 = scmp.le.s32.totalorder 2, %s13
      // Predicated region
      $region45: #{attn_block_forward.4} parent=5 // pred_check
        %p404 = pneg %p403
      $region46: #{attn_block_forward.4} parent=5 // pred_check_branch
        %406 = sbr.rel (%p404) target = $region48
      $region47: #{attn_block_forward.4} parent=5 // pred_region
        %s407 = ssub.s32 %s13, 2
        // Predicated region
        $region49: #{attn_block_forward.4} parent=47 // pred_check
          %p408 = pneg %p131
        $region50: #{attn_block_forward.4} parent=47 // pred_check_branch
          %410 = sbr.rel (%p408) target = $region52
        $region51: #{attn_block_forward.4} parent=47 // pred_region
          %p411 = scmp.lt.s32.totalorder %s19, 1
          %s412 = scalar_select %p411, %s19, 1
          %s413 = smul.addr %s412, 8
          %s414 = smul.addr %s413, 8
          %s415 = scalar_lea.vmem %s4, %s414
        $region52: #{attn_block_forward.4} parent=47 // pred_fallthru
          _
      $region48: #{attn_block_forward.4} parent=5 // pred_fallthru
        _
    $region6: #{attn_block_forward.4} parent=1 // loop_footer
      %s17 = sadd.s32 1, %s13
    $region7: #{attn_block_forward.4} parent=1 // loop_footer_branch
      %12 = sbr.rel target = $region3
    $region8: #{attn_block_forward.4} parent=1 // loop_exit
      _
    %416 = vsyncpa [#allocation3], 1
    %s417 = scalar_lea.sflag [#allocation3], 1
    %418 = vsyncpa %s417, 1

// kernel: attn_block_forward.5
$region0: #{attn_block_forward.5}
  #allocation0 [shape = 'u32[]', space=smem, size = 0x4, offset = 0x4, fixed_abs, tag = 'smem constant byte address 0x4 - core index']
  #allocation1 [shape = 'u32[72,128]{1,0:T(1,128)}', space=vmem, size = 0x9000, scoped, tag = 'internal scratch']
  #allocation2 [shape = 'f32[128,128]{1,0:T(8,128)}', space=vmem, size = 0x10000, scoped, tag = 'scratch operand']
  %s0 = inlined_call_operand.vmem [shape: bf16[128,128], index: 0, kind: input, shape index: {}]
  %s1 = inlined_call_operand.vmem [shape: bf16[128,256], index: 1, kind: input, shape index: {}]
  %s2 = inlined_call_operand.vmem [shape: f32[1,256], index: 2, kind: input, shape index: {}]
  %s3 = inlined_call_operand.vmem [shape: f32[128,256], index: 3, kind: output, shape index: {}]
  %s4 = sld [smem:[#allocation0]]
  $region128: #{attn_block_forward.5} parent=0
    _
  %s6 = ssub.s32 1, %s4
  %s7 = scalar_select 0, %s6, %s4
  $region1: #{attn_block_forward.5} parent=0
    #allocation3 [shape = 'u8[65536]{0}', space=vmem, size = 0x10000, scoped, tag = 'input window, operand 1']
    #allocation4 [shape = 'u8[131072]{0}', space=vmem, size = 0x20000, scoped, tag = 'output window, operand 0']
    loop: start=0, step=1, limit=4
    $region2: #{attn_block_forward.5} parent=1 // loop_pre_header
      _
    $region3: #{attn_block_forward.5} parent=1 // loop_header
      %s9 = sphi 0, %s13
      %p10 = scmp.ge.s32.totalorder %s9, 4
      %s16 = sphi 0, %s35
      %s17 = sphi 0, %s31
      %s18 = sphi 0, %s27
      %s19 = sphi 0, %s16
      %s20 = sphi 0, %s17
      %s21 = sphi 0, %s18
      %s22 = sphi 0, %s19
      %s23 = sphi 0, %s20
      %s24 = sphi 0, %s21
      %s40 = sphi 0, %s42
      %s43 = sphi 0, %s40
      %s44 = sphi 0, %s43
      %s60 = sphi 0, %s44
      %s68 = sphi 0, %s70
      %s71 = sphi 0, %s68
      %s72 = sphi 0, %s71
      %s88 = sphi 0, %s72
      %s94 = sphi 0, %s96
      %s97 = sphi 0, %s94
      %s98 = sphi 0, %s97
      %s114 = sphi 0, %s98
      %s122 = sphi 0, %s124
      %s125 = sphi 0, %s122
      %s126 = sphi 0, %s125
      %s142 = sphi 0, %s126
    $region4: #{attn_block_forward.5} parent=1 // loop_header_branch
      %12 = sbr.rel (%p10) target = $region8
    $region5: #{attn_block_forward.5} parent=1 // loop_body
      %s14 = ssub.s32 %s9, 1
      %s15 = ssub.s32 %s9, 2
      %s25 = sadd.s32 1, %s18
      %p26 = scmp.ge.s32.totalorder %s25, 1
      %s27 = scalar_select %p26, 0, %s25
      %s28 = sadd.s32 1, %s17
      %s29 = scalar_select %p26, %s28, %s17
      %p30 = scmp.ge.s32.totalorder %s29, 2
      %s31 = scalar_select %p30, 0, %s29
      %s32 = sadd.s32 1, %s16
      %s33 = scalar_select %p30, %s32, %s16
      %p34 = scmp.ge.s32.totalorder %s33, 1
      %s35 = scalar_select %p34, 0, %s33
      %s36 = ssub.s32 %s16, %s35
      %s37 = ssub.s32 %s18, %s27
      %s38 = sor.u32 %s36, %s37
      %p39 = scmp.eq.s32.totalorder %s38, 0
      %s41 = sadd.s32 %s40, 1
      %s42 = scalar_select %p39, %s40, %s41
      %p45 = pneg %p39
      %p46 = scmp.eq.s32.totalorder %s9, 1
      %p47 = por %p45, %p46
      %p48 = scmp.ne.s32.totalorder %s40, %s43
      %p49 = scmp.eq.s32.totalorder %s9, 0
      %p50 = por %p48, %p49
      %p51 = scmp.ne.s32.totalorder %s40, %s43
      %p52 = scmp.eq.s32.totalorder %s14, 1
      %p53 = por %p51, %p52
      %p54 = scmp.ne.s32.totalorder %s43, %s44
      %p55 = scmp.eq.s32.totalorder %s14, 0
      %p56 = por %p54, %p55
      %p57 = scmp.ne.s32.totalorder %s43, %s44
      %p58 = scmp.eq.s32.totalorder %s15, 1
      %p59 = por %p57, %p58
      %p61 = scmp.ne.s32.totalorder %s44, %s60
      %p62 = scmp.eq.s32.totalorder %s15, 0
      %p63 = por %p61, %p62
      %s64 = ssub.s32 %s18, %s27
      %s65 = ssub.s32 %s17, %s31
      %s66 = sor.u32 %s64, %s65
      %p67 = scmp.eq.s32.totalorder %s66, 0
      %s69 = sadd.s32 %s68, 1
      %s70 = scalar_select %p67, %s68, %s69
      %p73 = pneg %p67
      %p74 = scmp.eq.s32.totalorder %s9, 1
      %p75 = por %p73, %p74
      %p76 = scmp.ne.s32.totalorder %s68, %s71
      %p77 = scmp.eq.s32.totalorder %s9, 0
      %p78 = por %p76, %p77
      %p79 = scmp.ne.s32.totalorder %s68, %s71
      %p80 = scmp.eq.s32.totalorder %s14, 1
      %p81 = por %p79, %p80
      %p82 = scmp.ne.s32.totalorder %s71, %s72
      %p83 = scmp.eq.s32.totalorder %s14, 0
      %p84 = por %p82, %p83
      %p85 = scmp.ne.s32.totalorder %s71, %s72
      %p86 = scmp.eq.s32.totalorder %s15, 1
      %p87 = por %p85, %p86
      %p89 = scmp.ne.s32.totalorder %s72, %s88
      %p90 = scmp.eq.s32.totalorder %s15, 0
      %p91 = por %p89, %p90
      %s92 = ssub.s32 %s17, %s31
      %p93 = scmp.eq.s32.totalorder %s92, 0
      %s95 = sadd.s32 %s94, 1
      %s96 = scalar_select %p93, %s94, %s95
      %p99 = pneg %p93
      %p100 = scmp.eq.s32.totalorder %s9, 1
      %p101 = por %p99, %p100
      %p102 = scmp.ne.s32.totalorder %s94, %s97
      %p103 = scmp.eq.s32.totalorder %s9, 0
      %p104 = por %p102, %p103
      %p105 = scmp.ne.s32.totalorder %s94, %s97
      %p106 = scmp.eq.s32.totalorder %s14, 1
      %p107 = por %p105, %p106
      %p108 = scmp.ne.s32.totalorder %s97, %s98
      %p109 = scmp.eq.s32.totalorder %s14, 0
      %p110 = por %p108, %p109
      %p111 = scmp.ne.s32.totalorder %s97, %s98
      %p112 = scmp.eq.s32.totalorder %s15, 1
      %p113 = por %p111, %p112
      %p115 = scmp.ne.s32.totalorder %s98, %s114
      %p116 = scmp.eq.s32.totalorder %s15, 0
      %p117 = por %p115, %p116
      %s118 = ssub.s32 %s16, %s35
      %s119 = ssub.s32 %s17, %s31
      %s120 = sor.u32 %s118, %s119
      %p121 = scmp.eq.s32.totalorder %s120, 0
      %s123 = sadd.s32 %s122, 1
      %s124 = scalar_select %p121, %s122, %s123
      %p127 = pneg %p121
      %p128 = scmp.eq.s32.totalorder %s9, 1
      %p129 = por %p127, %p128
      %p130 = scmp.ne.s32.totalorder %s122, %s125
      %p131 = scmp.eq.s32.totalorder %s9, 0
      %p132 = por %p130, %p131
      %p133 = scmp.ne.s32.totalorder %s122, %s125
      %p134 = scmp.eq.s32.totalorder %s14, 1
      %p135 = por %p133, %p134
      %p136 = scmp.ne.s32.totalorder %s125, %s126
      %p137 = scmp.eq.s32.totalorder %s14, 0
      %p138 = por %p136, %p137
      %p139 = scmp.ne.s32.totalorder %s125, %s126
      %p140 = scmp.eq.s32.totalorder %s15, 1
      %p141 = por %p139, %p140
      %p143 = scmp.ne.s32.totalorder %s126, %s142
      %p144 = scmp.eq.s32.totalorder %s15, 0
      %p145 = por %p143, %p144
      %p146 = scmp.le.s32.totalorder 1, %s9
      %p147 = scmp.lt.s32.totalorder %s9, 3
      %p148 = pnand %p146, %p147
      %p149 = pneg %p148
      // Predicated region
      $region9: #{attn_block_forward.5} parent=5 // pred_check
        _
      $region10: #{attn_block_forward.5} parent=5 // pred_check_branch
        %151 = sbr.rel (%p148) target = $region12
      $region11: #{attn_block_forward.5} parent=5 // pred_region
        %s152 = ssub.s32 %s9, 1
        // Predicated region
        $region13: #{attn_block_forward.5} parent=11 // pred_check
          %p153 = pneg %p56
        $region14: #{attn_block_forward.5} parent=11 // pred_check_branch
          %155 = sbr.rel (%p153) target = $region16
        $region15: #{attn_block_forward.5} parent=11 // pred_region
          %s156 = smul.u32 16, %s19
          %p157 = scmp.lt.s32.totalorder %s156, 15
          %s158 = scalar_select %p157, %s156, 15
          %p159 = scmp.lt.s32.totalorder %s21, 0
          %s160 = scalar_select %p159, %s21, 0
          %s161 = sadd.s32 %s160, %s158
          %s162 = smul.addr %s161, 4
          %s163 = scalar_lea.vmem %s0, %s162
          %s164 = smul.u32 16, %s19
        $region16: #{attn_block_forward.5} parent=11 // pred_fallthru
          _
      $region12: #{attn_block_forward.5} parent=5 // pred_fallthru
        _
      %p165 = scmp.lt.s32.totalorder %s9, 2
      // Predicated region
      $region17: #{attn_block_forward.5} parent=5 // pred_check
        %p166 = pneg %p165
      $region18: #{attn_block_forward.5} parent=5 // pred_check_branch
        %168 = sbr.rel (%p166) target = $region20
      $region19: #{attn_block_forward.5} parent=5 // pred_region
        // Predicated region
        $region21: #{attn_block_forward.5} parent=19 // pred_check
          %p169 = pneg %p78
        $region22: #{attn_block_forward.5} parent=19 // pred_check_branch
          %171 = sbr.rel (%p169) target = $region24
        $region23: #{attn_block_forward.5} parent=19 // pred_region
          %s172 = sand.u32 %s68, 1
          %s173 = sand.u32 %s68, 1
          %s174 = smul.addr %s173, 64
          %s175 = scalar_lea.vmem [#allocation3], %s174
          %s176 = smul.u32 16, %s18
          %s177 = smul.addr %s176, 2
          %s178 = sadd.s32 %s17, %s177
          %s179 = smul.addr %s178, 4
          %s180 = scalar_lea.vmem %s1, %s179
          // Predicated region
          $region25: #{attn_block_forward.5} parent=23 // pred_check
            _
          $region26: #{attn_block_forward.5} parent=23 // pred_check_branch
            %182 = sbr.rel (0) target = $region28
          $region27: #{attn_block_forward.5} parent=23 // pred_region
            // Predicated region
            $region29: #{attn_block_forward.5} parent=27 // pred_check
              _
            $region30: #{attn_block_forward.5} parent=27 // pred_check_branch
              %184 = sbr.rel target = $region32
            $region31: #{attn_block_forward.5} parent=27 // pred_region
              // Predicated region
              $region44: #{attn_block_forward.5} parent=31 // pred_check
                _
              $region45: #{attn_block_forward.5} parent=31 // pred_check_branch
                %230 = sbr.rel (0) target = $region47
              $region46: #{attn_block_forward.5} parent=31 // pred_region
                loop: start=0, step=1, limit=1
                $region48: #{attn_block_forward.5} parent=46 // loop_pre_header
                  _
                $region49: #{attn_block_forward.5} parent=46 // loop_header
                  %s232 = sphi 0, %s236
                  %p233 = scmp.ge.s32.totalorder %s232, 1
                  %s237 = sphi %s180, %s180
                  %s238 = sphi %s175, %s175
                $region50: #{attn_block_forward.5} parent=46 // loop_header_branch
                  %235 = sbr.rel (%p233) target = $region54
                $region51: #{attn_block_forward.5} parent=46 // loop_body
                  _
                $region52: #{attn_block_forward.5} parent=46 // loop_footer
                  %s236 = sadd.s32 1, %s232
                $region53: #{attn_block_forward.5} parent=46 // loop_footer_branch
                  %231 = sbr.rel target = $region49
                $region54: #{attn_block_forward.5} parent=46 // loop_exit
                  _
                %s240 = ssub.s32 16, 1
                loop: start=0, step=1, limit=1
                $region55: #{attn_block_forward.5} parent=46 // loop_pre_header
                  _
                $region56: #{attn_block_forward.5} parent=46 // loop_header
                  %s242 = sphi 0, %s246
                  %p243 = scmp.ge.s32.totalorder %s242, 1
                  %s247 = sphi %s180, %s180
                  %s248 = sphi %s175, %s175
                $region57: #{attn_block_forward.5} parent=46 // loop_header_branch
                  %245 = sbr.rel (%p243) target = $region61
                $region58: #{attn_block_forward.5} parent=46 // loop_body
                  %v249 = vld [vmem:[%s247] sm:%s240]
                  %250 = vst [vmem:[%s248] sm:%s240] %v249
                  %v251 = vld [vmem:[%s247 + $0x8] sm:%s240]
                  %252 = vst [vmem:[%s248 + $0x4] sm:%s240] %v251
                  %v253 = vld [vmem:[%s247 + $0x10] sm:%s240]
                  %254 = vst [vmem:[%s248 + $0x8] sm:%s240] %v253
                  %v255 = vld [vmem:[%s247 + $0x18] sm:%s240]
                  %256 = vst [vmem:[%s248 + $0xc] sm:%s240] %v255
                  %v257 = vld [vmem:[%s247 + $0x20] sm:%s240]
                  %258 = vst [vmem:[%s248 + $0x10] sm:%s240] %v257
                  %v259 = vld [vmem:[%s247 + $0x28] sm:%s240]
                  %260 = vst [vmem:[%s248 + $0x14] sm:%s240] %v259
                  %v261 = vld [vmem:[%s247 + $0x30] sm:%s240]
                  %262 = vst [vmem:[%s248 + $0x18] sm:%s240] %v261
                  %v263 = vld [vmem:[%s247 + $0x38] sm:%s240]
                  %264 = vst [vmem:[%s248 + $0x1c] sm:%s240] %v263
                  %v265 = vld [vmem:[%s247 + $0x40] sm:%s240]
                  %266 = vst [vmem:[%s248 + $0x20] sm:%s240] %v265
                  %v267 = vld [vmem:[%s247 + $0x48] sm:%s240]
                  %268 = vst [vmem:[%s248 + $0x24] sm:%s240] %v267
                  %v269 = vld [vmem:[%s247 + $0x50] sm:%s240]
                  %270 = vst [vmem:[%s248 + $0x28] sm:%s240] %v269
                  %v271 = vld [vmem:[%s247 + $0x58] sm:%s240]
                  %272 = vst [vmem:[%s248 + $0x2c] sm:%s240] %v271
                  %v273 = vld [vmem:[%s247 + $0x60] sm:%s240]
                  %274 = vst [vmem:[%s248 + $0x30] sm:%s240] %v273
                  %v275 = vld [vmem:[%s247 + $0x68] sm:%s240]
                  %276 = vst [vmem:[%s248 + $0x34] sm:%s240] %v275
                  %v277 = vld [vmem:[%s247 + $0x70] sm:%s240]
                  %278 = vst [vmem:[%s248 + $0x38] sm:%s240] %v277
                  %v279 = vld [vmem:[%s247 + $0x78] sm:%s240]
                  %280 = vst [vmem:[%s248 + $0x3c] sm:%s240] %v279
                $region59: #{attn_block_forward.5} parent=46 // loop_footer
                  %s246 = sadd.s32 1, %s242
                $region60: #{attn_block_forward.5} parent=46 // loop_footer_branch
                  %241 = sbr.rel target = $region56
                $region61: #{attn_block_forward.5} parent=46 // loop_exit
                  _
              $region47: #{attn_block_forward.5} parent=31 // pred_fallthru
                _
            $region32: #{attn_block_forward.5} parent=27 // pred_fallthru
              _
            // Predicated region
            $region33: #{attn_block_forward.5} parent=27 // pred_check
              _
            $region34: #{attn_block_forward.5} parent=27 // pred_check_branch
              %186 = sbr.rel (0) target = $region36
            $region35: #{attn_block_forward.5} parent=27 // pred_region
              %s188 = ssub.s32 16, 1
              loop: start=0, step=1, limit=1
              $region37: #{attn_block_forward.5} parent=35 // loop_pre_header
                _
              $region38: #{attn_block_forward.5} parent=35 // loop_header
                %s190 = sphi 0, %s194
                %p191 = scmp.ge.s32.totalorder %s190, 1
                %s195 = sphi %s180, %s180
                %s196 = sphi %s175, %s175
              $region39: #{attn_block_forward.5} parent=35 // loop_header_branch
                %193 = sbr.rel (%p191) target = $region43
              $region40: #{attn_block_forward.5} parent=35 // loop_body
                %v197 = vld [vmem:[%s195] sm:%s188]
                %198 = vst [vmem:[%s196] sm:%s188] %v197
                %v199 = vld [vmem:[%s195 + $0x8] sm:%s188]
                %200 = vst [vmem:[%s196 + $0x4] sm:%s188] %v199
                %v201 = vld [vmem:[%s195 + $0x10] sm:%s188]
                %202 = vst [vmem:[%s196 + $0x8] sm:%s188] %v201
                %v203 = vld [vmem:[%s195 + $0x18] sm:%s188]
                %204 = vst [vmem:[%s196 + $0xc] sm:%s188] %v203
                %v205 = vld [vmem:[%s195 + $0x20] sm:%s188]
                %206 = vst [vmem:[%s196 + $0x10] sm:%s188] %v205
                %v207 = vld [vmem:[%s195 + $0x28] sm:%s188]
                %208 = vst [vmem:[%s196 + $0x14] sm:%s188] %v207
                %v209 = vld [vmem:[%s195 + $0x30] sm:%s188]
                %210 = vst [vmem:[%s196 + $0x18] sm:%s188] %v209
                %v211 = vld [vmem:[%s195 + $0x38] sm:%s188]
                %212 = vst [vmem:[%s196 + $0x1c] sm:%s188] %v211
                %v213 = vld [vmem:[%s195 + $0x40] sm:%s188]
                %214 = vst [vmem:[%s196 + $0x20] sm:%s188] %v213
                %v215 = vld [vmem:[%s195 + $0x48] sm:%s188]
                %216 = vst [vmem:[%s196 + $0x24] sm:%s188] %v215
                %v217 = vld [vmem:[%s195 + $0x50] sm:%s188]
                %218 = vst [vmem:[%s196 + $0x28] sm:%s188] %v217
                %v219 = vld [vmem:[%s195 + $0x58] sm:%s188]
                %220 = vst [vmem:[%s196 + $0x2c] sm:%s188] %v219
                %v221 = vld [vmem:[%s195 + $0x60] sm:%s188]
                %222 = vst [vmem:[%s196 + $0x30] sm:%s188] %v221
                %v223 = vld [vmem:[%s195 + $0x68] sm:%s188]
                %224 = vst [vmem:[%s196 + $0x34] sm:%s188] %v223
                %v225 = vld [vmem:[%s195 + $0x70] sm:%s188]
                %226 = vst [vmem:[%s196 + $0x38] sm:%s188] %v225
                %v227 = vld [vmem:[%s195 + $0x78] sm:%s188]
                %228 = vst [vmem:[%s196 + $0x3c] sm:%s188] %v227
              $region41: #{attn_block_forward.5} parent=35 // loop_footer
                %s194 = sadd.s32 1, %s190
              $region42: #{attn_block_forward.5} parent=35 // loop_footer_branch
                %189 = sbr.rel target = $region38
              $region43: #{attn_block_forward.5} parent=35 // loop_exit
                _
            $region36: #{attn_block_forward.5} parent=27 // pred_fallthru
              _
          $region28: #{attn_block_forward.5} parent=23 // pred_fallthru
            _
          %281 = vnop
        $region24: #{attn_block_forward.5} parent=19 // pred_fallthru
          _
        // Predicated region
        $region62: #{attn_block_forward.5} parent=19 // pred_check
          %p282 = pneg %p104
        $region63: #{attn_block_forward.5} parent=19 // pred_check_branch
          %284 = sbr.rel (%p282) target = $region65
        $region64: #{attn_block_forward.5} parent=19 // pred_region
          %p285 = scmp.lt.s32.totalorder %s17, 1
          %s286 = scalar_select %p285, %s17, 1
          %s287 = scalar_lea.vmem %s2, %s286
        $region65: #{attn_block_forward.5} parent=19 // pred_fallthru
          _
      $region20: #{attn_block_forward.5} parent=5 // pred_fallthru
        _
      %p288 = scmp.le.s32.totalorder 1, %s9
      %p289 = scmp.lt.s32.totalorder %s9, 3
      %p290 = pnand %p288, %p289
      %p291 = pneg %p290
      // Predicated region
      $region66: #{attn_block_forward.5} parent=5 // pred_check
        _
      $region67: #{attn_block_forward.5} parent=5 // pred_check_branch
        %293 = sbr.rel (%p290) target = $region69
      $region68: #{attn_block_forward.5} parent=5 // pred_region
        %s294 = ssub.s32 %s9, 1
        %s295 = sand.u32 %s71, 1
        %s296 = sand.u32 %s71, 1
        %s297 = smul.addr %s296, 64
        %s298 = scalar_lea.vmem [#allocation3], %s297
        // Predicated region
        $region70: #{attn_block_forward.5} parent=68 // pred_check
          %p299 = pneg %p84
        $region71: #{attn_block_forward.5} parent=68 // pred_check_branch
          %301 = sbr.rel (%p299) target = $region73
        $region72: #{attn_block_forward.5} parent=68 // pred_region
          _
        $region73: #{attn_block_forward.5} parent=68 // pred_fallthru
          _
        %s302 = smul.u32 16, %s19
        %p303 = scmp.lt.s32.totalorder %s302, 15
        %s304 = scalar_select %p303, %s302, 15
        %p305 = scmp.lt.s32.totalorder %s21, 0
        %s306 = scalar_select %p305, %s21, 0
        %s307 = sadd.s32 %s306, %s304
        %s308 = smul.addr %s307, 4
        %s309 = scalar_lea.vmem %s0, %s308
        %p310 = pneg %p56
        %p311 = pneg %p53
        %s312 = sand.u32 %s71, 1
        %s313 = sand.u32 %s71, 1
        %s314 = smul.addr %s313, 64
        %s315 = scalar_lea.vmem [#allocation3], %s314
        %p316 = pneg %p84
        %p317 = pneg %p81
        %p318 = scmp.lt.s32.totalorder %s20, 1
        %s319 = scalar_select %p318, %s20, 1
        %s320 = scalar_lea.vmem %s2, %s319
        %p321 = pneg %p110
        %p322 = pneg %p107
        %p323 = pneg %p138
        %p324 = pneg %p135
        %s325 = sand.u32 %s125, 1
        %s326 = sand.u32 %s125, 1
        %s327 = smul.addr %s326, 128
        %s328 = scalar_lea.vmem [#allocation4], %s327
        %s329 = smul.u32 16, %s19
        %p330 = scmp.lt.s32.totalorder %s329, 15
        %s331 = scalar_select %p330, %s329, 15
        %p332 = scmp.lt.s32.totalorder %s21, 0
        %s333 = scalar_select %p332, %s21, 0
        %s334 = sadd.s32 %s333, %s331
        %s335 = smul.addr %s334, 4
        %s336 = scalar_lea.vmem %s0, %s335
        %s337 = smul.u32 16, %s19
        %s338 = smul.u32 16, %s21
        %p339 = scmp.lt.s32.totalorder %s20, 1
        %s340 = scalar_select %p339, %s20, 1
        %s341 = scalar_lea.vmem %s2, %s340
        %s342 = smul.u32 16, %s19
        %p343 = scmp.eq.s32.totalorder %s21, 0
        // Predicated region
        $region74: #{attn_block_forward.5} parent=68 // pred_check
          %p344 = pneg %p343
        $region75: #{attn_block_forward.5} parent=68 // pred_check_branch
          %346 = sbr.rel (%p344) target = $region77
        $region76: #{attn_block_forward.5} parent=68 // pred_region
          %347 = vst [vmem:[#allocation2] sm:$0xff] 0.0
          %348 = vst [vmem:[#allocation2 + $0x8] sm:$0xff] 0.0
          %349 = vst [vmem:[#allocation2 + $0x10] sm:$0xff] 0.0
          %350 = vst [vmem:[#allocation2 + $0x18] sm:$0xff] 0.0
          %351 = vst [vmem:[#allocation2 + $0x20] sm:$0xff] 0.0
          %352 = vst [vmem:[#allocation2 + $0x28] sm:$0xff] 0.0
          %353 = vst [vmem:[#allocation2 + $0x30] sm:$0xff] 0.0
          %354 = vst [vmem:[#allocation2 + $0x38] sm:$0xff] 0.0
          %355 = vst [vmem:[#allocation2 + $0x40] sm:$0xff] 0.0
          %356 = vst [vmem:[#allocation2 + $0x48] sm:$0xff] 0.0
          %357 = vst [vmem:[#allocation2 + $0x50] sm:$0xff] 0.0
          %358 = vst [vmem:[#allocation2 + $0x58] sm:$0xff] 0.0
          %359 = vst [vmem:[#allocation2 + $0x60] sm:$0xff] 0.0
          %360 = vst [vmem:[#allocation2 + $0x68] sm:$0xff] 0.0
          %361 = vst [vmem:[#allocation2 + $0x70] sm:$0xff] 0.0
          %362 = vst [vmem:[#allocation2 + $0x78] sm:$0xff] 0.0
        $region77: #{attn_block_forward.5} parent=68 // pred_fallthru
          _
        %v363 = vld [vmem:[#allocation2] sm:$0xff]
        %v364 = vld [vmem:[#allocation2 + $0x8] sm:$0xff]
        %v365 = vld [vmem:[#allocation2 + $0x10] sm:$0xff]
        %v366 = vld [vmem:[#allocation2 + $0x18] sm:$0xff]
        %v367 = vld [vmem:[#allocation2 + $0x20] sm:$0xff]
        %v368 = vld [vmem:[#allocation2 + $0x28] sm:$0xff]
        %v369 = vld [vmem:[#allocation2 + $0x30] sm:$0xff]
        %v370 = vld [vmem:[#allocation2 + $0x38] sm:$0xff]
        %v371 = vld [vmem:[#allocation2 + $0x40] sm:$0xff]
        %v372 = vld [vmem:[#allocation2 + $0x48] sm:$0xff]
        %v373 = vld [vmem:[#allocation2 + $0x50] sm:$0xff]
        %v374 = vld [vmem:[#allocation2 + $0x58] sm:$0xff]
        %v375 = vld [vmem:[#allocation2 + $0x60] sm:$0xff]
        %v376 = vld [vmem:[#allocation2 + $0x68] sm:$0xff]
        %v377 = vld [vmem:[#allocation2 + $0x70] sm:$0xff]
        %v378 = vld [vmem:[#allocation2 + $0x78] sm:$0xff]
        %v379 = vld [vmem:[%s336] sm:$0xf]
        %v380 = vld [vmem:[%s336 + $0x4] sm:$0xf]
        %v381 = vld [vmem:[%s336 + $0x8] sm:$0xf]
        %v382 = vld [vmem:[%s336 + $0xc] sm:$0xf]
        %v383 = vld [vmem:[%s336 + $0x10] sm:$0xf]
        %v384 = vld [vmem:[%s336 + $0x14] sm:$0xf]
        %v385 = vld [vmem:[%s336 + $0x18] sm:$0xf]
        %v386 = vld [vmem:[%s336 + $0x1c] sm:$0xf]
        %v387 = vld [vmem:[%s336 + $0x20] sm:$0xf]
        %v388 = vld [vmem:[%s336 + $0x24] sm:$0xf]
        %v389 = vld [vmem:[%s336 + $0x28] sm:$0xf]
        %v390 = vld [vmem:[%s336 + $0x2c] sm:$0xf]
        %v391 = vld [vmem:[%s336 + $0x30] sm:$0xf]
        %v392 = vld [vmem:[%s336 + $0x34] sm:$0xf]
        %v393 = vld [vmem:[%s336 + $0x38] sm:$0xf]
        %v394 = vld [vmem:[%s336 + $0x3c] sm:$0xf]
        %v395 = vld [vmem:[%s298] sm:$0xf]
        %v396 = vld [vmem:[%s298 + $0x4] sm:$0xf]
        %v397 = vld [vmem:[%s298 + $0x8] sm:$0xf]
        %v398 = vld [vmem:[%s298 + $0xc] sm:$0xf]
        %v399 = vld [vmem:[%s298 + $0x10] sm:$0xf]
        %v400 = vld [vmem:[%s298 + $0x14] sm:$0xf]
        %v401 = vld [vmem:[%s298 + $0x18] sm:$0xf]
        %v402 = vld [vmem:[%s298 + $0x1c] sm:$0xf]
        %v403 = vld [vmem:[%s298 + $0x20] sm:$0xf]
        %v404 = vld [vmem:[%s298 + $0x24] sm:$0xf]
        %v405 = vld [vmem:[%s298 + $0x28] sm:$0xf]
        %v406 = vld [vmem:[%s298 + $0x2c] sm:$0xf]
        %v407 = vld [vmem:[%s298 + $0x30] sm:$0xf]
        %v408 = vld [vmem:[%s298 + $0x34] sm:$0xf]
        %v409 = vld [vmem:[%s298 + $0x38] sm:$0xf]
        %v410 = vld [vmem:[%s298 + $0x3c] sm:$0xf]
        %v427 = vunpack.c.l.b16 %v379
        %v428 = vunpack.c.l.b16 %v380
        %v429 = vunpack.c.l.b16 %v381
        %v430 = vunpack.c.l.b16 %v382
        %v431 = vunpack.c.l.b16 %v383
        %v432 = vunpack.c.l.b16 %v384
        %v433 = vunpack.c.l.b16 %v385
        %v434 = vunpack.c.l.b16 %v386
        %v435 = vunpack.c.l.b16 %v387
        %v436 = vunpack.c.l.b16 %v388
        %v437 = vunpack.c.l.b16 %v389
        %v438 = vunpack.c.l.b16 %v390
        %v439 = vunpack.c.l.b16 %v391
        %v440 = vunpack.c.l.b16 %v392
        %v441 = vunpack.c.l.b16 %v393
        %v442 = vunpack.c.l.b16 %v394
        %v443 = vpack.c.b16 %v428, %v427
        %v444 = vpack.c.b16 %v430, %v429
        %v445 = vpack.c.b16 %v432, %v431
        %v446 = vpack.c.b16 %v434, %v433
        %v447 = vpack.c.b16 %v436, %v435
        %v448 = vpack.c.b16 %v438, %v437
        %v449 = vpack.c.b16 %v440, %v439
        %v450 = vpack.c.b16 %v442, %v441
        %v475 = vunpack.c.l.b16 %v395
        %v476 = vunpack.c.l.b16 %v396
        %v477 = vunpack.c.l.b16 %v397
        %v478 = vunpack.c.l.b16 %v398
        %v479 = vunpack.c.l.b16 %v399
        %v480 = vunpack.c.l.b16 %v400
        %v481 = vunpack.c.l.b16 %v401
        %v482 = vunpack.c.l.b16 %v402
        %v483 = vunpack.c.l.b16 %v403
        %v484 = vunpack.c.l.b16 %v404
        %v485 = vunpack.c.l.b16 %v405
        %v486 = vunpack.c.l.b16 %v406
        %v487 = vunpack.c.l.b16 %v407
        %v488 = vunpack.c.l.b16 %v408
        %v489 = vunpack.c.l.b16 %v409
        %v490 = vunpack.c.l.b16 %v410
        %v491 = vpack.c.b16 %v476, %v475
        %v492 = vpack.c.b16 %v478, %v477
        %v493 = vpack.c.b16 %v480, %v479
        %v494 = vpack.c.b16 %v482, %v481
        %v495 = vpack.c.b16 %v484, %v483
        %v496 = vpack.c.b16 %v486, %v485
        %v497 = vpack.c.b16 %v488, %v487
        %v498 = vpack.c.b16 %v490, %v489
        %507 = vmatpush.bf16.msra.mxu0 %v498
        %508 = vmatpush.bf16.msra.mxu0 %v497
        %509 = vmatpush.bf16.msra.mxu0 %v496
        %510 = vmatpush.bf16.msra.mxu0 %v495
        %511 = vmatpush.bf16.msra.mxu0 %v494
        %512 = vmatpush.bf16.msra.mxu0 %v493
        %513 = vmatpush.bf16.msra.mxu0 %v492
        %514 = vmatpush.bf16.msra.mxu0 %v491
        %515 = vmatmul.bf16.gmra.mxu0 %v443
        %v516 = vpop.f32.mrf.mxu0
        %v517 = vadd.f32 0.0, %v516
        %v518 = vpop.f32.mrf.mxu0
        %v519 = vadd.f32 0.0, %v518
        %520 = vmatmul.bf16.gmra.mxu0 %v444
        %v521 = vpop.f32.mrf.mxu0
        %v522 = vadd.f32 0.0, %v521
        %v523 = vpop.f32.mrf.mxu0
        %v524 = vadd.f32 0.0, %v523
        %525 = vmatmul.bf16.gmra.mxu0 %v445
        %v526 = vpop.f32.mrf.mxu0
        %v527 = vadd.f32 0.0, %v526
        %v528 = vpop.f32.mrf.mxu0
        %v529 = vadd.f32 0.0, %v528
        %530 = vmatmul.bf16.gmra.mxu0 %v446
        %v531 = vpop.f32.mrf.mxu0
        %v532 = vadd.f32 0.0, %v531
        %v533 = vpop.f32.mrf.mxu0
        %v534 = vadd.f32 0.0, %v533
        %535 = vmatmul.bf16.gmra.mxu0 %v447
        %v536 = vpop.f32.mrf.mxu0
        %v537 = vadd.f32 0.0, %v536
        %v538 = vpop.f32.mrf.mxu0
        %v539 = vadd.f32 0.0, %v538
        %540 = vmatmul.bf16.gmra.mxu0 %v448
        %v541 = vpop.f32.mrf.mxu0
        %v542 = vadd.f32 0.0, %v541
        %v543 = vpop.f32.mrf.mxu0
        %v544 = vadd.f32 0.0, %v543
        %545 = vmatmul.bf16.gmra.mxu0 %v449
        %v546 = vpop.f32.mrf.mxu0
        %v547 = vadd.f32 0.0, %v546
        %v548 = vpop.f32.mrf.mxu0
        %v549 = vadd.f32 0.0, %v548
        %550 = vmatmul.bf16.gmra.mxu0 %v450
        %v551 = vpop.f32.mrf.mxu0
        %v552 = vadd.f32 0.0, %v551
        %v553 = vpop.f32.mrf.mxu0
        %v554 = vadd.f32 0.0, %v553
        %555 = vdwg.mxu0
        %v556 = vadd.f32 %v363, %v517
        %v557 = vadd.f32 %v364, %v519
        %v558 = vadd.f32 %v365, %v522
        %v559 = vadd.f32 %v366, %v524
        %v560 = vadd.f32 %v367, %v527
        %v561 = vadd.f32 %v368, %v529
        %v562 = vadd.f32 %v369, %v532
        %v563 = vadd.f32 %v370, %v534
        %v564 = vadd.f32 %v371, %v537
        %v565 = vadd.f32 %v372, %v539
        %v566 = vadd.f32 %v373, %v542
        %v567 = vadd.f32 %v374, %v544
        %v568 = vadd.f32 %v375, %v547
        %v569 = vadd.f32 %v376, %v549
        %v570 = vadd.f32 %v377, %v552
        %v571 = vadd.f32 %v378, %v554
        %572 = vst [vmem:[#allocation2] sm:$0xff] %v556
        %573 = vst [vmem:[#allocation2 + $0x8] sm:$0xff] %v557
        %574 = vst [vmem:[#allocation2 + $0x10] sm:$0xff] %v558
        %575 = vst [vmem:[#allocation2 + $0x18] sm:$0xff] %v559
        %576 = vst [vmem:[#allocation2 + $0x20] sm:$0xff] %v560
        %577 = vst [vmem:[#allocation2 + $0x28] sm:$0xff] %v561
        %578 = vst [vmem:[#allocation2 + $0x30] sm:$0xff] %v562
        %579 = vst [vmem:[#allocation2 + $0x38] sm:$0xff] %v563
        %580 = vst [vmem:[#allocation2 + $0x40] sm:$0xff] %v564
        %581 = vst [vmem:[#allocation2 + $0x48] sm:$0xff] %v565
        %582 = vst [vmem:[#allocation2 + $0x50] sm:$0xff] %v566
        %583 = vst [vmem:[#allocation2 + $0x58] sm:$0xff] %v567
        %584 = vst [vmem:[#allocation2 + $0x60] sm:$0xff] %v568
        %585 = vst [vmem:[#allocation2 + $0x68] sm:$0xff] %v569
        %586 = vst [vmem:[#allocation2 + $0x70] sm:$0xff] %v570
        %587 = vst [vmem:[#allocation2 + $0x78] sm:$0xff] %v571
        // Predicated region
        $region78: #{attn_block_forward.5} parent=68 // pred_check
          %p588 = pneg %p343
        $region79: #{attn_block_forward.5} parent=68 // pred_check_branch
          %590 = sbr.rel (%p588) target = $region81
        $region80: #{attn_block_forward.5} parent=68 // pred_region
          %v591 = vld [vmem:[#allocation2] sm:$0xff]
          %v592 = vld [vmem:[#allocation2 + $0x8] sm:$0xff]
          %v593 = vld [vmem:[#allocation2 + $0x10] sm:$0xff]
          %v594 = vld [vmem:[#allocation2 + $0x18] sm:$0xff]
          %v595 = vld [vmem:[#allocation2 + $0x20] sm:$0xff]
          %v596 = vld [vmem:[#allocation2 + $0x28] sm:$0xff]
          %v597 = vld [vmem:[#allocation2 + $0x30] sm:$0xff]
          %v598 = vld [vmem:[#allocation2 + $0x38] sm:$0xff]
          %v599 = vld [vmem:[#allocation2 + $0x40] sm:$0xff]
          %v600 = vld [vmem:[#allocation2 + $0x48] sm:$0xff]
          %v601 = vld [vmem:[#allocation2 + $0x50] sm:$0xff]
          %v602 = vld [vmem:[#allocation2 + $0x58] sm:$0xff]
          %v603 = vld [vmem:[#allocation2 + $0x60] sm:$0xff]
          %v604 = vld [vmem:[#allocation2 + $0x68] sm:$0xff]
          %v605 = vld [vmem:[#allocation2 + $0x70] sm:$0xff]
          %v606 = vld [vmem:[#allocation2 + $0x78] sm:$0xff]
          %v607 = vld [vmem:[%s341] sm:$0x1]
          %v609 = vperm.slane %v607, 0
          %v611 = vadd.f32 %v591, %v609
          %v612 = vadd.f32 %v592, %v609
          %v613 = vadd.f32 %v593, %v609
          %v614 = vadd.f32 %v594, %v609
          %v615 = vadd.f32 %v595, %v609
          %v616 = vadd.f32 %v596, %v609
          %v617 = vadd.f32 %v597, %v609
          %v618 = vadd.f32 %v598, %v609
          %v619 = vadd.f32 %v599, %v609
          %v620 = vadd.f32 %v600, %v609
          %v621 = vadd.f32 %v601, %v609
          %v622 = vadd.f32 %v602, %v609
          %v623 = vadd.f32 %v603, %v609
          %v624 = vadd.f32 %v604, %v609
          %v625 = vadd.f32 %v605, %v609
          %v626 = vadd.f32 %v606, %v609
          %627 = vst [vmem:[%s328] sm:$0xff] %v611
          %628 = vst [vmem:[%s328 + $0x8] sm:$0xff] %v612
          %629 = vst [vmem:[%s328 + $0x10] sm:$0xff] %v613
          %630 = vst [vmem:[%s328 + $0x18] sm:$0xff] %v614
          %631 = vst [vmem:[%s328 + $0x20] sm:$0xff] %v615
          %632 = vst [vmem:[%s328 + $0x28] sm:$0xff] %v616
          %633 = vst [vmem:[%s328 + $0x30] sm:$0xff] %v617
          %634 = vst [vmem:[%s328 + $0x38] sm:$0xff] %v618
          %635 = vst [vmem:[%s328 + $0x40] sm:$0xff] %v619
          %636 = vst [vmem:[%s328 + $0x48] sm:$0xff] %v620
          %637 = vst [vmem:[%s328 + $0x50] sm:$0xff] %v621
          %638 = vst [vmem:[%s328 + $0x58] sm:$0xff] %v622
          %639 = vst [vmem:[%s328 + $0x60] sm:$0xff] %v623
          %640 = vst [vmem:[%s328 + $0x68] sm:$0xff] %v624
          %641 = vst [vmem:[%s328 + $0x70] sm:$0xff] %v625
          %642 = vst [vmem:[%s328 + $0x78] sm:$0xff] %v626
        $region81: #{attn_block_forward.5} parent=68 // pred_fallthru
          _
        %s643 = sand.u32 %s125, 1
        %s644 = sand.u32 %s125, 1
        %s645 = smul.addr %s644, 128
        %s646 = scalar_lea.vmem [#allocation4], %s645
        // Predicated region
        $region82: #{attn_block_forward.5} parent=68 // pred_check
          %p647 = pneg %p135
        $region83: #{attn_block_forward.5} parent=68 // pred_check_branch
          %649 = sbr.rel (%p647) target = $region85
        $region84: #{attn_block_forward.5} parent=68 // pred_region
          %s650 = smul.u32 16, %s19
          %s651 = smul.addr %s650, 2
          %s652 = sadd.s32 %s20, %s651
          %s653 = smul.addr %s652, 8
          %s654 = scalar_lea.vmem %s3, %s653
          // Predicated region
          $region86: #{attn_block_forward.5} parent=84 // pred_check
            _
          $region87: #{attn_block_forward.5} parent=84 // pred_check_branch
            %656 = sbr.rel (0) target = $region89
          $region88: #{attn_block_forward.5} parent=84 // pred_region
            // Predicated region
            $region90: #{attn_block_forward.5} parent=88 // pred_check
              _
            $region91: #{attn_block_forward.5} parent=88 // pred_check_branch
              %658 = sbr.rel (0) target = $region93
            $region92: #{attn_block_forward.5} parent=88 // pred_region
              // Predicated region
              $region105: #{attn_block_forward.5} parent=92 // pred_check
                _
              $region106: #{attn_block_forward.5} parent=92 // pred_check_branch
                %704 = sbr.rel (0) target = $region108
              $region107: #{attn_block_forward.5} parent=92 // pred_region
                loop: start=0, step=1, limit=1
                $region109: #{attn_block_forward.5} parent=107 // loop_pre_header
                  _
                $region110: #{attn_block_forward.5} parent=107 // loop_header
                  %s706 = sphi 0, %s710
                  %p707 = scmp.ge.s32.totalorder %s706, 1
                  %s711 = sphi %s646, %s646
                  %s712 = sphi %s654, %s654
                $region111: #{attn_block_forward.5} parent=107 // loop_header_branch
                  %709 = sbr.rel (%p707) target = $region115
                $region112: #{attn_block_forward.5} parent=107 // loop_body
                  %v713 = vld [vmem:[%s711] sm:$0xff]
                  %714 = vst [vmem:[%s712] sm:$0xff] %v713
                  %v715 = vld [vmem:[%s711 + $0x8] sm:$0xff]
                  %716 = vst [vmem:[%s712 + $0x10] sm:$0xff] %v715
                  %v717 = vld [vmem:[%s711 + $0x10] sm:$0xff]
                  %718 = vst [vmem:[%s712 + $0x20] sm:$0xff] %v717
                  %v719 = vld [vmem:[%s711 + $0x18] sm:$0xff]
                  %720 = vst [vmem:[%s712 + $0x30] sm:$0xff] %v719
                  %v721 = vld [vmem:[%s711 + $0x20] sm:$0xff]
                  %722 = vst [vmem:[%s712 + $0x40] sm:$0xff] %v721
                  %v723 = vld [vmem:[%s711 + $0x28] sm:$0xff]
                  %724 = vst [vmem:[%s712 + $0x50] sm:$0xff] %v723
                  %v725 = vld [vmem:[%s711 + $0x30] sm:$0xff]
                  %726 = vst [vmem:[%s712 + $0x60] sm:$0xff] %v725
                  %v727 = vld [vmem:[%s711 + $0x38] sm:$0xff]
                  %728 = vst [vmem:[%s712 + $0x70] sm:$0xff] %v727
                  %v729 = vld [vmem:[%s711 + $0x40] sm:$0xff]
                  %730 = vst [vmem:[%s712 + $0x80] sm:$0xff] %v729
                  %v731 = vld [vmem:[%s711 + $0x48] sm:$0xff]
                  %732 = vst [vmem:[%s712 + $0x90] sm:$0xff] %v731
                  %v733 = vld [vmem:[%s711 + $0x50] sm:$0xff]
                  %734 = vst [vmem:[%s712 + $0xa0] sm:$0xff] %v733
                  %v735 = vld [vmem:[%s711 + $0x58] sm:$0xff]
                  %736 = vst [vmem:[%s712 + $0xb0] sm:$0xff] %v735
                  %v737 = vld [vmem:[%s711 + $0x60] sm:$0xff]
                  %738 = vst [vmem:[%s712 + $0xc0] sm:$0xff] %v737
                  %v739 = vld [vmem:[%s711 + $0x68] sm:$0xff]
                  %740 = vst [vmem:[%s712 + $0xd0] sm:$0xff] %v739
                  %v741 = vld [vmem:[%s711 + $0x70] sm:$0xff]
                  %742 = vst [vmem:[%s712 + $0xe0] sm:$0xff] %v741
                  %v743 = vld [vmem:[%s711 + $0x78] sm:$0xff]
                  %744 = vst [vmem:[%s712 + $0xf0] sm:$0xff] %v743
                $region113: #{attn_block_forward.5} parent=107 // loop_footer
                  %s710 = sadd.s32 1, %s706
                $region114: #{attn_block_forward.5} parent=107 // loop_footer_branch
                  %705 = sbr.rel target = $region110
                $region115: #{attn_block_forward.5} parent=107 // loop_exit
                  _
              $region108: #{attn_block_forward.5} parent=92 // pred_fallthru
                _
              // Predicated region
              $region116: #{attn_block_forward.5} parent=92 // pred_check
                _
              $region117: #{attn_block_forward.5} parent=92 // pred_check_branch
                %746 = sbr.rel target = $region119
              $region118: #{attn_block_forward.5} parent=92 // pred_region
                _
              $region119: #{attn_block_forward.5} parent=92 // pred_fallthru
                _
            $region93: #{attn_block_forward.5} parent=88 // pred_fallthru
              _
            // Predicated region
            $region94: #{attn_block_forward.5} parent=88 // pred_check
              _
            $region95: #{attn_block_forward.5} parent=88 // pred_check_branch
              %660 = sbr.rel target = $region97
            $region96: #{attn_block_forward.5} parent=88 // pred_region
              %s662 = ssub.s32 256, 1
              loop: start=0, step=1, limit=1
              $region98: #{attn_block_forward.5} parent=96 // loop_pre_header
                _
              $region99: #{attn_block_forward.5} parent=96 // loop_header
                %s664 = sphi 0, %s668
                %p665 = scmp.ge.s32.totalorder %s664, 1
                %s669 = sphi %s646, %s646
                %s670 = sphi %s654, %s654
              $region100: #{attn_block_forward.5} parent=96 // loop_header_branch
                %667 = sbr.rel (%p665) target = $region104
              $region101: #{attn_block_forward.5} parent=96 // loop_body
                %v671 = vld [vmem:[%s669] sm:%s662]
                %672 = vst [vmem:[%s670] sm:%s662] %v671
                %v673 = vld [vmem:[%s669 + $0x8] sm:%s662]
                %674 = vst [vmem:[%s670 + $0x10] sm:%s662] %v673
                %v675 = vld [vmem:[%s669 + $0x10] sm:%s662]
                %676 = vst [vmem:[%s670 + $0x20] sm:%s662] %v675
                %v677 = vld [vmem:[%s669 + $0x18] sm:%s662]
                %678 = vst [vmem:[%s670 + $0x30] sm:%s662] %v677
                %v679 = vld [vmem:[%s669 + $0x20] sm:%s662]
                %680 = vst [vmem:[%s670 + $0x40] sm:%s662] %v679
                %v681 = vld [vmem:[%s669 + $0x28] sm:%s662]
                %682 = vst [vmem:[%s670 + $0x50] sm:%s662] %v681
                %v683 = vld [vmem:[%s669 + $0x30] sm:%s662]
                %684 = vst [vmem:[%s670 + $0x60] sm:%s662] %v683
                %v685 = vld [vmem:[%s669 + $0x38] sm:%s662]
                %686 = vst [vmem:[%s670 + $0x70] sm:%s662] %v685
                %v687 = vld [vmem:[%s669 + $0x40] sm:%s662]
                %688 = vst [vmem:[%s670 + $0x80] sm:%s662] %v687
                %v689 = vld [vmem:[%s669 + $0x48] sm:%s662]
                %690 = vst [vmem:[%s670 + $0x90] sm:%s662] %v689
                %v691 = vld [vmem:[%s669 + $0x50] sm:%s662]
                %692 = vst [vmem:[%s670 + $0xa0] sm:%s662] %v691
                %v693 = vld [vmem:[%s669 + $0x58] sm:%s662]
                %694 = vst [vmem:[%s670 + $0xb0] sm:%s662] %v693
                %v695 = vld [vmem:[%s669 + $0x60] sm:%s662]
                %696 = vst [vmem:[%s670 + $0xc0] sm:%s662] %v695
                %v697 = vld [vmem:[%s669 + $0x68] sm:%s662]
                %698 = vst [vmem:[%s670 + $0xd0] sm:%s662] %v697
                %v699 = vld [vmem:[%s669 + $0x70] sm:%s662]
                %700 = vst [vmem:[%s670 + $0xe0] sm:%s662] %v699
                %v701 = vld [vmem:[%s669 + $0x78] sm:%s662]
                %702 = vst [vmem:[%s670 + $0xf0] sm:%s662] %v701
              $region102: #{attn_block_forward.5} parent=96 // loop_footer
                %s668 = sadd.s32 1, %s664
              $region103: #{attn_block_forward.5} parent=96 // loop_footer_branch
                %663 = sbr.rel target = $region99
              $region104: #{attn_block_forward.5} parent=96 // loop_exit
                _
            $region97: #{attn_block_forward.5} parent=88 // pred_fallthru
              _
          $region89: #{attn_block_forward.5} parent=84 // pred_fallthru
            _
          %747 = vnop
        $region85: #{attn_block_forward.5} parent=68 // pred_fallthru
          _
      $region69: #{attn_block_forward.5} parent=5 // pred_fallthru
        _
      %p748 = scmp.le.s32.totalorder 2, %s9
      // Predicated region
      $region120: #{attn_block_forward.5} parent=5 // pred_check
        %p749 = pneg %p748
      $region121: #{attn_block_forward.5} parent=5 // pred_check_branch
        %751 = sbr.rel (%p749) target = $region123
      $region122: #{attn_block_forward.5} parent=5 // pred_region
        %s752 = ssub.s32 %s9, 2
        // Predicated region
        $region124: #{attn_block_forward.5} parent=122 // pred_check
          %p753 = pneg %p141
        $region125: #{attn_block_forward.5} parent=122 // pred_check_branch
          %755 = sbr.rel (%p753) target = $region127
        $region126: #{attn_block_forward.5} parent=122 // pred_region
          %s756 = sand.u32 %s126, 1
          %s757 = sand.u32 %s126, 1
          %s758 = smul.addr %s757, 128
          %s759 = scalar_lea.vmem [#allocation4], %s758
        $region127: #{attn_block_forward.5} parent=122 // pred_fallthru
          _
      $region123: #{attn_block_forward.5} parent=5 // pred_fallthru
        _
    $region6: #{attn_block_forward.5} parent=1 // loop_footer
      %s13 = sadd.s32 1, %s9
    $region7: #{attn_block_forward.5} parent=1 // loop_footer_branch
      %8 = sbr.rel target = $region3
    $region8: #{attn_block_forward.5} parent=1 // loop_exit
      _

// kernel: attn_block_forward.6
$region0: #{attn_block_forward.6}
  #allocation0 [shape = 'u32[]', space=smem, size = 0x4, offset = 0x4, fixed_abs, tag = 'smem constant byte address 0x4 - core index']
  #allocation1 [shape = 'u32[72,128]{1,0:T(1,128)}', space=vmem, size = 0x9000, scoped, tag = 'internal scratch']
  %s0 = inlined_call_operand.vmem [shape: bf16[2,64,64], index: 0, kind: input, shape index: {}]
  %s1 = inlined_call_operand.vmem [shape: bf16[2,64,64], index: 1, kind: input, shape index: {}]
  %s2 = inlined_call_operand.vmem [shape: bf16[2,64,64], index: 2, kind: input, shape index: {}]
  %s3 = inlined_call_operand.vmem [shape: f32[2,64,64], index: 3, kind: output, shape index: {}]
  %s4 = sld [smem:[#allocation0]]
  $region45: #{attn_block_forward.6} parent=0
    _
  %s6 = ssub.s32 1, %s4
  %s7 = scalar_select 0, %s6, %s4
  loop: start=0, step=1, limit=4
  $region2: #{attn_block_forward.6} parent=0 // loop_pre_header
    _
  $region3: #{attn_block_forward.6} parent=0 // loop_header
    %s9 = sphi 0, %s13
    %p10 = scmp.ge.s32.totalorder %s9, 4
    %s19 = sphi 0, %s21
    %s22 = sphi 0, %s19
    %s23 = sphi 0, %s22
    %s39 = sphi 0, %s23
    %s45 = sphi 0, %s47
    %s48 = sphi 0, %s45
    %s49 = sphi 0, %s48
    %s65 = sphi 0, %s49
    %s71 = sphi 0, %s73
    %s74 = sphi 0, %s71
    %s75 = sphi 0, %s74
    %s91 = sphi 0, %s75
    %s97 = sphi 0, %s99
    %s100 = sphi 0, %s97
    %s101 = sphi 0, %s100
    %s117 = sphi 0, %s101
  $region4: #{attn_block_forward.6} parent=0 // loop_header_branch
    %12 = sbr.rel (%p10) target = $region8
  $region5: #{attn_block_forward.6} parent=0 // loop_body
    %s14 = ssub.s32 %s9, 1
    %s15 = ssub.s32 %s9, 2
    %s16 = sadd.s32 %s9, 1
    %s17 = ssub.s32 %s9, %s16
    %p18 = scmp.eq.s32.totalorder %s17, 0
    %s20 = sadd.s32 %s19, 1
    %s21 = scalar_select %p18, %s19, %s20
    %p24 = pneg %p18
    %p25 = scmp.eq.s32.totalorder %s9, 1
    %p26 = por %p24, %p25
    %p27 = scmp.ne.s32.totalorder %s19, %s22
    %p28 = scmp.eq.s32.totalorder %s9, 0
    %p29 = por %p27, %p28
    %p30 = scmp.ne.s32.totalorder %s19, %s22
    %p31 = scmp.eq.s32.totalorder %s14, 1
    %p32 = por %p30, %p31
    %p33 = scmp.ne.s32.totalorder %s22, %s23
    %p34 = scmp.eq.s32.totalorder %s14, 0
    %p35 = por %p33, %p34
    %p36 = scmp.ne.s32.totalorder %s22, %s23
    %p37 = scmp.eq.s32.totalorder %s15, 1
    %p38 = por %p36, %p37
    %p40 = scmp.ne.s32.totalorder %s23, %s39
    %p41 = scmp.eq.s32.totalorder %s15, 0
    %p42 = por %p40, %p41
    %s43 = ssub.s32 %s9, %s16
    %p44 = scmp.eq.s32.totalorder %s43, 0
    %s46 = sadd.s32 %s45, 1
    %s47 = scalar_select %p44, %s45, %s46
    %p50 = pneg %p44
    %p51 = scmp.eq.s32.totalorder %s9, 1
    %p52 = por %p50, %p51
    %p53 = scmp.ne.s32.totalorder %s45, %s48
    %p54 = scmp.eq.s32.totalorder %s9, 0
    %p55 = por %p53, %p54
    %p56 = scmp.ne.s32.totalorder %s45, %s48
    %p57 = scmp.eq.s32.totalorder %s14, 1
    %p58 = por %p56, %p57
    %p59 = scmp.ne.s32.totalorder %s48, %s49
    %p60 = scmp.eq.s32.totalorder %s14, 0
    %p61 = por %p59, %p60
    %p62 = scmp.ne.s32.totalorder %s48, %s49
    %p63 = scmp.eq.s32.totalorder %s15, 1
    %p64 = por %p62, %p63
    %p66 = scmp.ne.s32.totalorder %s49, %s65
    %p67 = scmp.eq.s32.totalorder %s15, 0
    %p68 = por %p66, %p67
    %s69 = ssub.s32 %s9, %s16
    %p70 = scmp.eq.s32.totalorder %s69, 0
    %s72 = sadd.s32 %s71, 1
    %s73 = scalar_select %p70, %s71, %s72
    %p76 = pneg %p70
    %p77 = scmp.eq.s32.totalorder %s9, 1
    %p78 = por %p76, %p77
    %p79 = scmp.ne.s32.totalorder %s71, %s74
    %p80 = scmp.eq.s32.totalorder %s9, 0
    %p81 = por %p79, %p80
    %p82 = scmp.ne.s32.totalorder %s71, %s74
    %p83 = scmp.eq.s32.totalorder %s14, 1
    %p84 = por %p82, %p83
    %p85 = scmp.ne.s32.totalorder %s74, %s75
    %p86 = scmp.eq.s32.totalorder %s14, 0
    %p87 = por %p85, %p86
    %p88 = scmp.ne.s32.totalorder %s74, %s75
    %p89 = scmp.eq.s32.totalorder %s15, 1
    %p90 = por %p88, %p89
    %p92 = scmp.ne.s32.totalorder %s75, %s91
    %p93 = scmp.eq.s32.totalorder %s15, 0
    %p94 = por %p92, %p93
    %s95 = ssub.s32 %s9, %s16
    %p96 = scmp.eq.s32.totalorder %s95, 0
    %s98 = sadd.s32 %s97, 1
    %s99 = scalar_select %p96, %s97, %s98
    %p102 = pneg %p96
    %p103 = scmp.eq.s32.totalorder %s9, 1
    %p104 = por %p102, %p103
    %p105 = scmp.ne.s32.totalorder %s97, %s100
    %p106 = scmp.eq.s32.totalorder %s9, 0
    %p107 = por %p105, %p106
    %p108 = scmp.ne.s32.totalorder %s97, %s100
    %p109 = scmp.eq.s32.totalorder %s14, 1
    %p110 = por %p108, %p109
    %p111 = scmp.ne.s32.totalorder %s100, %s101
    %p112 = scmp.eq.s32.totalorder %s14, 0
    %p113 = por %p111, %p112
    %p114 = scmp.ne.s32.totalorder %s100, %s101
    %p115 = scmp.eq.s32.totalorder %s15, 1
    %p116 = por %p114, %p115
    %p118 = scmp.ne.s32.totalorder %s101, %s117
    %p119 = scmp.eq.s32.totalorder %s15, 0
    %p120 = por %p118, %p119
    %p121 = scmp.le.s32.totalorder 1, %s9
    %p122 = scmp.lt.s32.totalorder %s9, 3
    %p123 = pnand %p121, %p122
    %p124 = pneg %p123
    // Predicated region
    $region9: #{attn_block_forward.6} parent=5 // pred_check
      _
    $region10: #{attn_block_forward.6} parent=5 // pred_check_branch
      %126 = sbr.rel (%p123) target = $region12
    $region11: #{attn_block_forward.6} parent=5 // pred_region
      %s127 = ssub.s32 %s9, 1
    $region12: #{attn_block_forward.6} parent=5 // pred_fallthru
      _
    %p128 = scmp.lt.s32.totalorder %s9, 2
    // Predicated region
    $region13: #{attn_block_forward.6} parent=5 // pred_check
      %p129 = pneg %p128
    $region14: #{attn_block_forward.6} parent=5 // pred_check_branch
      %131 = sbr.rel (%p129) target = $region16
    $region15: #{attn_block_forward.6} parent=5 // pred_region
      // Predicated region
      $region17: #{attn_block_forward.6} parent=15 // pred_check
        %p132 = pneg %p29
      $region18: #{attn_block_forward.6} parent=15 // pred_check_branch
        %134 = sbr.rel (%p132) target = $region20
      $region19: #{attn_block_forward.6} parent=15 // pred_region
        %p135 = scmp.lt.s32.totalorder %s9, 1
        %s136 = scalar_select %p135, %s9, 1
        %s137 = smul.addr %s136, 8
        %s138 = smul.addr %s137, 4
        %s139 = scalar_lea.vmem %s0, %s138
      $region20: #{attn_block_forward.6} parent=15 // pred_fallthru
        _
      // Predicated region
      $region21: #{attn_block_forward.6} parent=15 // pred_check
        %p140 = pneg %p55
      $region22: #{attn_block_forward.6} parent=15 // pred_check_branch
        %142 = sbr.rel (%p140) target = $region24
      $region23: #{attn_block_forward.6} parent=15 // pred_region
        %p143 = scmp.lt.s32.totalorder %s9, 1
        %s144 = scalar_select %p143, %s9, 1
        %s145 = smul.addr %s144, 8
        %s146 = smul.addr %s145, 4
        %s147 = scalar_lea.vmem %s1, %s146
      $region24: #{attn_block_forward.6} parent=15 // pred_fallthru
        _
      // Predicated region
      $region25: #{attn_block_forward.6} parent=15 // pred_check
        %p148 = pneg %p81
      $region26: #{attn_block_forward.6} parent=15 // pred_check_branch
        %150 = sbr.rel (%p148) target = $region28
      $region27: #{attn_block_forward.6} parent=15 // pred_region
        %p151 = scmp.lt.s32.totalorder %s9, 1
        %s152 = scalar_select %p151, %s9, 1
        %s153 = smul.addr %s152, 8
        %s154 = smul.addr %s153, 4
        %s155 = scalar_lea.vmem %s2, %s154
      $region28: #{attn_block_forward.6} parent=15 // pred_fallthru
        _
    $region16: #{attn_block_forward.6} parent=5 // pred_fallthru
      _
    %p156 = scmp.le.s32.totalorder 1, %s9
    %p157 = scmp.lt.s32.totalorder %s9, 3
    %p158 = pnand %p156, %p157
    %p159 = pneg %p158
    // Predicated region
    $region29: #{attn_block_forward.6} parent=5 // pred_check
      _
    $region30: #{attn_block_forward.6} parent=5 // pred_check_branch
      %161 = sbr.rel (%p158) target = $region32
    $region31: #{attn_block_forward.6} parent=5 // pred_region
      %s162 = ssub.s32 %s9, 1
      %p163 = scmp.lt.s32.totalorder %s14, 1
      %s164 = scalar_select %p163, %s14, 1
      %s165 = smul.addr %s164, 8
      %s166 = smul.addr %s165, 4
      %s167 = scalar_lea.vmem %s0, %s166
      %p168 = pneg %p35
      %p169 = pneg %p32
      %p170 = scmp.lt.s32.totalorder %s14, 1
      %s171 = scalar_select %p170, %s14, 1
      %s172 = smul.addr %s171, 8
      %s173 = smul.addr %s172, 4
      %s174 = scalar_lea.vmem %s1, %s173
      %p175 = pneg %p61
      %p176 = pneg %p58
      %p177 = scmp.lt.s32.totalorder %s14, 1
      %s178 = scalar_select %p177, %s14, 1
      %s179 = smul.addr %s178, 8
      %s180 = smul.addr %s179, 4
      %s181 = scalar_lea.vmem %s2, %s180
      %p182 = pneg %p87
      %p183 = pneg %p84
      %p184 = pneg %p113
      %p185 = pneg %p110
      %p186 = scmp.lt.s32.totalorder %s14, 1
      %s187 = scalar_select %p186, %s14, 1
      %s188 = smul.addr %s187, 8
      %s189 = smul.addr %s188, 8
      %s190 = scalar_lea.vmem %s3, %s189
      %p191 = scmp.lt.s32.totalorder %s14, 1
      %s192 = scalar_select %p191, %s14, 1
      %s193 = smul.addr %s192, 8
      %s194 = smul.addr %s193, 4
      %s195 = scalar_lea.vmem %s0, %s194
      %p196 = scmp.lt.s32.totalorder %s14, 1
      %s197 = scalar_select %p196, %s14, 1
      %s198 = smul.addr %s197, 8
      %s199 = smul.addr %s198, 4
      %s200 = scalar_lea.vmem %s1, %s199
      %p201 = scmp.lt.s32.totalorder %s14, 1
      %s202 = scalar_select %p201, %s14, 1
      %s203 = smul.addr %s202, 8
      %s204 = smul.addr %s203, 4
      %s205 = scalar_lea.vmem %s2, %s204
      %p206 = scmp.lt.s32.totalorder %s14, 1
      %s207 = scalar_select %p206, %s14, 1
      %s208 = smul.addr %s207, 8
      %s209 = smul.addr %s208, 8
      %s210 = scalar_lea.vmem %s3, %s209
      %v212 = vld [vmem:[%s195] sm:$0xf]
      %v213 = vld [vmem:[%s195 + $0x4] sm:$0xf]
      %v214 = vld [vmem:[%s195 + $0x8] sm:$0xf]
      %v215 = vld [vmem:[%s195 + $0xc] sm:$0xf]
      %v216 = vld [vmem:[%s195 + $0x10] sm:$0xf]
      %v217 = vld [vmem:[%s195 + $0x14] sm:$0xf]
      %v218 = vld [vmem:[%s195 + $0x18] sm:$0xf]
      %v219 = vld [vmem:[%s195 + $0x1c] sm:$0xf]
      %v220 = vld [vmem:[%s200] sm:$0xf]
      %v221 = vld [vmem:[%s200 + $0x4] sm:$0xf]
      %v222 = vld [vmem:[%s200 + $0x8] sm:$0xf]
      %v223 = vld [vmem:[%s200 + $0xc] sm:$0xf]
      %v224 = vld [vmem:[%s200 + $0x10] sm:$0xf]
      %v225 = vld [vmem:[%s200 + $0x14] sm:$0xf]
      %v226 = vld [vmem:[%s200 + $0x18] sm:$0xf]
      %v227 = vld [vmem:[%s200 + $0x1c] sm:$0xf]
      %v228 = vld [vmem:[%s205] sm:$0xf]
      %v229 = vld [vmem:[%s205 + $0x4] sm:$0xf]
      %v230 = vld [vmem:[%s205 + $0x8] sm:$0xf]
      %v231 = vld [vmem:[%s205 + $0xc] sm:$0xf]
      %v232 = vld [vmem:[%s205 + $0x10] sm:$0xf]
      %v233 = vld [vmem:[%s205 + $0x14] sm:$0xf]
      %v234 = vld [vmem:[%s205 + $0x18] sm:$0xf]
      %v235 = vld [vmem:[%s205 + $0x1c] sm:$0xf]
      %v244 = vunpack.c.l.b16 %v212
      %v245 = vunpack.c.l.b16 %v213
      %v246 = vunpack.c.l.b16 %v214
      %v247 = vunpack.c.l.b16 %v215
      %v248 = vunpack.c.l.b16 %v216
      %v249 = vunpack.c.l.b16 %v217
      %v250 = vunpack.c.l.b16 %v218
      %v251 = vunpack.c.l.b16 %v219
      %v252 = vpack.c.b16 %v245, %v244
      %v253 = vpack.c.b16 %v247, %v246
      %v254 = vpack.c.b16 %v249, %v248
      %v255 = vpack.c.b16 %v251, %v250
      %v264 = vunpack.c.l.b16 %v220
      %v265 = vunpack.c.l.b16 %v221
      %v266 = vunpack.c.l.b16 %v222
      %v267 = vunpack.c.l.b16 %v223
      %v268 = vunpack.c.l.b16 %v224
      %v269 = vunpack.c.l.b16 %v225
      %v270 = vunpack.c.l.b16 %v226
      %v271 = vunpack.c.l.b16 %v227
      %v272 = vpack.c.b16 %v265, %v264
      %v273 = vpack.c.b16 %v267, %v266
      %v274 = vpack.c.b16 %v269, %v268
      %v275 = vpack.c.b16 %v271, %v270
      %vm276 = vcmask 523264
      %v278 = vsel %vm276, %v252, 0
      %v281 = vsel %vm276, %v253, 0
      %v284 = vsel %vm276, %v254, 0
      %v287 = vsel %vm276, %v255, 0
      %v290 = vsel %vm276, %v272, 0
      %v293 = vsel %vm276, %v273, 0
      %v296 = vsel %vm276, %v274, 0
      %v299 = vsel %vm276, %v275, 0
      %301 = vmatpush.bf16.xpose.msra.mxu0 0
      %302 = vmatpush.bf16.xpose.msra.mxu0 0
      %303 = vmatpush.bf16.xpose.msra.mxu0 0
      %304 = vmatpush.bf16.xpose.msra.mxu0 0
      %305 = vmatpush.bf16.xpose.msra.mxu0 %v299
      %306 = vmatpush.bf16.xpose.msra.mxu0 %v296
      %307 = vmatpush.bf16.xpose.msra.mxu0 %v293
      %308 = vmatpush.bf16.xpose.msra.mxu0 %v290
      %309 = vmatmul.bf16.gmra.mxu0 %v278
      %v310 = vpop.f32.mrf.mxu0
      %v311 = vadd.f32 0.0, %v310
      %v312 = vpop.f32.mrf.mxu0
      %v313 = vadd.f32 0.0, %v312
      %314 = vmatmul.bf16.gmra.mxu0 %v281
      %v315 = vpop.f32.mrf.mxu0
      %v316 = vadd.f32 0.0, %v315
      %v317 = vpop.f32.mrf.mxu0
      %v318 = vadd.f32 0.0, %v317
      %319 = vmatmul.bf16.gmra.mxu0 %v284
      %v320 = vpop.f32.mrf.mxu0
      %v321 = vadd.f32 0.0, %v320
      %v322 = vpop.f32.mrf.mxu0
      %v323 = vadd.f32 0.0, %v322
      %324 = vmatmul.bf16.gmra.mxu0 %v287
      %v325 = vpop.f32.mrf.mxu0
      %v326 = vadd.f32 0.0, %v325
      %v327 = vpop.f32.mrf.mxu0
      %v328 = vadd.f32 0.0, %v327
      %329 = vdwg.mxu0
      %v330 = vsel %vm276, %v311, -inf
      %331 = vmax.xlane.f32.xlu0 %v330
      %v332 = vpop.xlane.xlu0 %331
      %v333 = vsel %vm276, %v313, -inf
      %334 = vmax.xlane.f32.xlu0 %v333
      %v335 = vpop.xlane.xlu0 %334
      %v336 = vsel %vm276, %v316, -inf
      %337 = vmax.xlane.f32.xlu0 %v336
      %v338 = vpop.xlane.xlu0 %337
      %v339 = vsel %vm276, %v318, -inf
      %340 = vmax.xlane.f32.xlu0 %v339
      %v341 = vpop.xlane.xlu0 %340
      %v342 = vsel %vm276, %v321, -inf
      %343 = vmax.xlane.f32.xlu0 %v342
      %v344 = vpop.xlane.xlu0 %343
      %v345 = vsel %vm276, %v323, -inf
      %346 = vmax.xlane.f32.xlu0 %v345
      %v347 = vpop.xlane.xlu0 %346
      %v348 = vsel %vm276, %v326, -inf
      %349 = vmax.xlane.f32.xlu0 %v348
      %v350 = vpop.xlane.xlu0 %349
      %v351 = vsel %vm276, %v328, -inf
      %352 = vmax.xlane.f32.xlu0 %v351
      %v353 = vpop.xlane.xlu0 %352
      %v354 = vsub.f32 %v311, %v332
      %v355 = vsub.f32 %v313, %v335
      %v356 = vsub.f32 %v316, %v338
      %v357 = vsub.f32 %v318, %v341
      %v358 = vsub.f32 %v321, %v344
      %v359 = vsub.f32 %v323, %v347
      %v360 = vsub.f32 %v326, %v350
      %v361 = vsub.f32 %v328, %v353
      %v362 = vmul.f32 %v354, 1.442695
      %v363 = vpow.pop %v362
      %v364 = vmul.f32 %v355, 1.442695
      %v365 = vpow.pop %v364
      %v366 = vmul.f32 %v356, 1.442695
      %v367 = vpow.pop %v366
      %v368 = vmul.f32 %v357, 1.442695
      %v369 = vpow.pop %v368
      %v370 = vmul.f32 %v358, 1.442695
      %v371 = vpow.pop %v370
      %v372 = vmul.f32 %v359, 1.442695
      %v373 = vpow.pop %v372
      %v374 = vmul.f32 %v360, 1.442695
      %v375 = vpow.pop %v374
      %v376 = vmul.f32 %v361, 1.442695
      %v377 = vpow.pop %v376
      %v378 = vsel %vm276, %v363, 0.0
      %379 = vadd.xlane.f32.xlu0 %v378
      %v380 = vpop.xlane.xlu0 %379
      %v381 = vsel %vm276, %v365, 0.0
      %382 = vadd.xlane.f32.xlu0 %v381
      %v383 = vpop.xlane.xlu0 %382
      %v384 = vsel %vm276, %v367, 0.0
      %385 = vadd.xlane.f32.xlu0 %v384
      %v386 = vpop.xlane.xlu0 %385
      %v387 = vsel %vm276, %v369, 0.0
      %388 = vadd.xlane.f32.xlu0 %v387
      %v389 = vpop.xlane.xlu0 %388
      %v390 = vsel %vm276, %v371, 0.0
      %391 = vadd.xlane.f32.xlu0 %v390
      %v392 = vpop.xlane.xlu0 %391
      %v393 = vsel %vm276, %v373, 0.0
      %394 = vadd.xlane.f32.xlu0 %v393
      %v395 = vpop.xlane.xlu0 %394
      %v396 = vsel %vm276, %v375, 0.0
      %397 = vadd.xlane.f32.xlu0 %v396
      %v398 = vpop.xlane.xlu0 %397
      %v399 = vsel %vm276, %v377, 0.0
      %400 = vadd.xlane.f32.xlu0 %v399
      %v401 = vpop.xlane.xlu0 %400
      %v402 = vrcp.pop %v380
      %v403 = vrcp.pop %v383
      %v404 = vrcp.pop %v386
      %v405 = vrcp.pop %v389
      %v406 = vrcp.pop %v392
      %v407 = vrcp.pop %v395
      %v408 = vrcp.pop %v398
      %v409 = vrcp.pop %v401
      %v410 = vmul.f32 %v363, %v402
      %v411 = vmul.f32 %v365, %v403
      %v412 = vmul.f32 %v367, %v404
      %v413 = vmul.f32 %v369, %v405
      %v414 = vmul.f32 %v371, %v406
      %v415 = vmul.f32 %v373, %v407
      %v416 = vmul.f32 %v375, %v408
      %v417 = vmul.f32 %v377, %v409
      %v418 = vpack.c.bf16 %v411, %v410
      %v419 = vpack.c.bf16 %v413, %v412
      %v420 = vpack.c.bf16 %v415, %v414
      %v421 = vpack.c.bf16 %v417, %v416
      %v430 = vunpack.c.l.b16 %v228
      %v431 = vunpack.c.l.b16 %v229
      %v432 = vunpack.c.l.b16 %v230
      %v433 = vunpack.c.l.b16 %v231
      %v434 = vunpack.c.l.b16 %v232
      %v435 = vunpack.c.l.b16 %v233
      %v436 = vunpack.c.l.b16 %v234
      %v437 = vunpack.c.l.b16 %v235
      %v438 = vpack.c.b16 %v431, %v430
      %v439 = vpack.c.b16 %v433, %v432
      %v440 = vpack.c.b16 %v435, %v434
      %v441 = vpack.c.b16 %v437, %v436
      %v447 = vsel %vm276, %v418, 0
      %v450 = vsel %vm276, %v419, 0
      %v453 = vsel %vm276, %v420, 0
      %v456 = vsel %vm276, %v421, 0
      %458 = vmatpush.bf16.msra.mxu0 0
      %459 = vmatpush.bf16.msra.mxu0 0
      %460 = vmatpush.bf16.msra.mxu0 0
      %461 = vmatpush.bf16.msra.mxu0 0
      %462 = vmatpush.bf16.msra.mxu0 %v441
      %463 = vmatpush.bf16.msra.mxu0 %v440
      %464 = vmatpush.bf16.msra.mxu0 %v439
      %465 = vmatpush.bf16.msra.mxu0 %v438
      %466 = vmatmul.bf16.gmra.mxu0 %v447
      %v467 = vpop.f32.mrf.mxu0
      %v468 = vadd.f32 0.0, %v467
      %v469 = vpop.f32.mrf.mxu0
      %v470 = vadd.f32 0.0, %v469
      %471 = vmatmul.bf16.gmra.mxu0 %v450
      %v472 = vpop.f32.mrf.mxu0
      %v473 = vadd.f32 0.0, %v472
      %v474 = vpop.f32.mrf.mxu0
      %v475 = vadd.f32 0.0, %v474
      %476 = vmatmul.bf16.gmra.mxu0 %v453
      %v477 = vpop.f32.mrf.mxu0
      %v478 = vadd.f32 0.0, %v477
      %v479 = vpop.f32.mrf.mxu0
      %v480 = vadd.f32 0.0, %v479
      %481 = vmatmul.bf16.gmra.mxu0 %v456
      %v482 = vpop.f32.mrf.mxu0
      %v483 = vadd.f32 0.0, %v482
      %v484 = vpop.f32.mrf.mxu0
      %v485 = vadd.f32 0.0, %v484
      %486 = vdwg.mxu0
      %487 = vst.msk [vmem:[%s210] sm:$0xff] %vm276, %v468
      %488 = vst.msk [vmem:[%s210 + $0x8] sm:$0xff] %vm276, %v470
      %489 = vst.msk [vmem:[%s210 + $0x10] sm:$0xff] %vm276, %v473
      %490 = vst.msk [vmem:[%s210 + $0x18] sm:$0xff] %vm276, %v475
      %491 = vst.msk [vmem:[%s210 + $0x20] sm:$0xff] %vm276, %v478
      %492 = vst.msk [vmem:[%s210 + $0x28] sm:$0xff] %vm276, %v480
      %493 = vst.msk [vmem:[%s210 + $0x30] sm:$0xff] %vm276, %v483
      %494 = vst.msk [vmem:[%s210 + $0x38] sm:$0xff] %vm276, %v485
      %p495 = scmp.lt.s32.totalorder %s14, 1
      %s496 = scalar_select %p495, %s14, 1
      %s497 = smul.addr %s496, 8
      %s498 = smul.addr %s497, 8
      %s499 = scalar_lea.vmem %s3, %s498
      // Predicated region
      $region33: #{attn_block_forward.6} parent=31 // pred_check
        %p500 = pneg %p110
      $region34: #{attn_block_forward.6} parent=31 // pred_check_branch
        %502 = sbr.rel (%p500) target = $region36
      $region35: #{attn_block_forward.6} parent=31 // pred_region
        _
      $region36: #{attn_block_forward.6} parent=31 // pred_fallthru
        _
    $region32: #{attn_block_forward.6} parent=5 // pred_fallthru
      _
    %p503 = scmp.le.s32.totalorder 2, %s9
    // Predicated region
    $region37: #{attn_block_forward.6} parent=5 // pred_check
      %p504 = pneg %p503
    $region38: #{attn_block_forward.6} parent=5 // pred_check_branch
      %506 = sbr.rel (%p504) target = $region40
    $region39: #{attn_block_forward.6} parent=5 // pred_region
      %s507 = ssub.s32 %s9, 2
      // Predicated region
      $region41: #{attn_block_forward.6} parent=39 // pred_check
        %p508 = pneg %p116
      $region42: #{attn_block_forward.6} parent=39 // pred_check_branch
        %510 = sbr.rel (%p508) target = $region44
      $region43: #{attn_block_forward.6} parent=39 // pred_region
        %p511 = scmp.lt.s32.totalorder %s15, 1
        %s512 = scalar_select %p511, %s15, 1
        %s513 = smul.addr %s512, 8
        %s514 = smul.addr %s513, 8
        %s515 = scalar_lea.vmem %s3, %s514
      $region44: #{attn_block_forward.6} parent=39 // pred_fallthru
        _
    $region40: #{attn_block_forward.6} parent=5 // pred_fallthru
      _
  $region6: #{attn_block_forward.6} parent=0 // loop_footer
    %s13 = sadd.s32 1, %s9
  $region7: #{attn_block_forward.6} parent=0 // loop_footer_branch
    %8 = sbr.rel target = $region3
  $region8: #{attn_block_forward.6} parent=0 // loop_exit
    _

// kernel: attn_block_forward.7
$region0: #{attn_block_forward.7}
  #allocation0 [shape = 'u32[]', space=smem, size = 0x4, offset = 0x4, fixed_abs, tag = 'smem constant byte address 0x4 - core index']
  #allocation1 [shape = 'u32[72,128]{1,0:T(1,128)}', space=vmem, size = 0x9000, scoped, tag = 'internal scratch']
  #allocation2 [shape = 'f32[128,128]{1,0:T(8,128)}', space=vmem, size = 0x10000, scoped, tag = 'scratch operand']
  %s0 = inlined_call_operand.vmem [shape: bf16[128,128], index: 0, kind: input, shape index: {}]
  %s1 = inlined_call_operand.vmem [shape: bf16[128,128], index: 1, kind: input, shape index: {}]
  %s2 = inlined_call_operand.vmem [shape: f32[1,128], index: 2, kind: input, shape index: {}]
  %s3 = inlined_call_operand.vmem [shape: f32[128,128], index: 3, kind: input, shape index: {}]
  %s4 = inlined_call_operand.hbm [shape: f32[128,128], index: 4, kind: output, shape index: {}]
  %s5 = sld [smem:[#allocation0]]
  $region34: #{attn_block_forward.7} parent=0
    _
  %s7 = ssub.s32 1, %s5
  %s8 = scalar_select 0, %s7, %s5
  $region1: #{attn_block_forward.7} parent=0
    #allocation3 [shape = 'u8[65536]{0}', space=vmem, size = 0x10000, scoped, tag = 'output window, operand 0, single buffered']
    #allocation4 [shape = 's32[1]{0}', space=sflag, size = 0x4, scoped, tag = 'scoped memory for attn_block_forward.7']
    %9 = vsyncpa [#allocation4], 0
    // Predicated region
    $region2: #{attn_block_forward.7} parent=1 // pred_check
      _
    $region3: #{attn_block_forward.7} parent=1 // pred_check_branch
      %11 = sbr.rel (0) target = $region5
    $region4: #{attn_block_forward.7} parent=1 // pred_region
      _
    $region5: #{attn_block_forward.7} parent=1 // pred_fallthru
      _
    // Predicated region
    $region6: #{attn_block_forward.7} parent=1 // pred_check
      _
    $region7: #{attn_block_forward.7} parent=1 // pred_check_branch
      %13 = sbr.rel (0) target = $region9
    $region8: #{attn_block_forward.7} parent=1 // pred_region
      _
    $region9: #{attn_block_forward.7} parent=1 // pred_fallthru
      _
    // Predicated region
    $region10: #{attn_block_forward.7} parent=1 // pred_check
      _
    $region11: #{attn_block_forward.7} parent=1 // pred_check_branch
      %15 = sbr.rel (0) target = $region13
    $region12: #{attn_block_forward.7} parent=1 // pred_region
      _
    $region13: #{attn_block_forward.7} parent=1 // pred_fallthru
      _
    // Predicated region
    $region14: #{attn_block_forward.7} parent=1 // pred_check
      _
    $region15: #{attn_block_forward.7} parent=1 // pred_check_branch
      %17 = sbr.rel (0) target = $region17
    $region16: #{attn_block_forward.7} parent=1 // pred_region
      _
    $region17: #{attn_block_forward.7} parent=1 // pred_fallthru
      _
    %p18 = scmp.eq.s32.totalorder 0, 0
    // Predicated region
    $region18: #{attn_block_forward.7} parent=1 // pred_check
      %p19 = pneg %p18
    $region19: #{attn_block_forward.7} parent=1 // pred_check_branch
      %21 = sbr.rel (%p19) target = $region21
    $region20: #{attn_block_forward.7} parent=1 // pred_region
      %22 = vst [vmem:[#allocation2] sm:$0xff] 0.0
      %23 = vst [vmem:[#allocation2 + $0x8] sm:$0xff] 0.0
      %24 = vst [vmem:[#allocation2 + $0x10] sm:$0xff] 0.0
      %25 = vst [vmem:[#allocation2 + $0x18] sm:$0xff] 0.0
      %26 = vst [vmem:[#allocation2 + $0x20] sm:$0xff] 0.0
      %27 = vst [vmem:[#allocation2 + $0x28] sm:$0xff] 0.0
      %28 = vst [vmem:[#allocation2 + $0x30] sm:$0xff] 0.0
      %29 = vst [vmem:[#allocation2 + $0x38] sm:$0xff] 0.0
      %30 = vst [vmem:[#allocation2 + $0x40] sm:$0xff] 0.0
      %31 = vst [vmem:[#allocation2 + $0x48] sm:$0xff] 0.0
      %32 = vst [vmem:[#allocation2 + $0x50] sm:$0xff] 0.0
      %33 = vst [vmem:[#allocation2 + $0x58] sm:$0xff] 0.0
      %34 = vst [vmem:[#allocation2 + $0x60] sm:$0xff] 0.0
      %35 = vst [vmem:[#allocation2 + $0x68] sm:$0xff] 0.0
      %36 = vst [vmem:[#allocation2 + $0x70] sm:$0xff] 0.0
      %37 = vst [vmem:[#allocation2 + $0x78] sm:$0xff] 0.0
    $region21: #{attn_block_forward.7} parent=1 // pred_fallthru
      _
    %v38 = vld [vmem:[#allocation2] sm:$0xff]
    %v39 = vld [vmem:[#allocation2 + $0x8] sm:$0xff]
    %v40 = vld [vmem:[#allocation2 + $0x10] sm:$0xff]
    %v41 = vld [vmem:[#allocation2 + $0x18] sm:$0xff]
    %v42 = vld [vmem:[#allocation2 + $0x20] sm:$0xff]
    %v43 = vld [vmem:[#allocation2 + $0x28] sm:$0xff]
    %v44 = vld [vmem:[#allocation2 + $0x30] sm:$0xff]
    %v45 = vld [vmem:[#allocation2 + $0x38] sm:$0xff]
    %v46 = vld [vmem:[#allocation2 + $0x40] sm:$0xff]
    %v47 = vld [vmem:[#allocation2 + $0x48] sm:$0xff]
    %v48 = vld [vmem:[#allocation2 + $0x50] sm:$0xff]
    %v49 = vld [vmem:[#allocation2 + $0x58] sm:$0xff]
    %v50 = vld [vmem:[#allocation2 + $0x60] sm:$0xff]
    %v51 = vld [vmem:[#allocation2 + $0x68] sm:$0xff]
    %v52 = vld [vmem:[#allocation2 + $0x70] sm:$0xff]
    %v53 = vld [vmem:[#allocation2 + $0x78] sm:$0xff]
    %v54 = vld [vmem:[%s0] sm:$0xf]
    %v55 = vld [vmem:[%s0 + $0x4] sm:$0xf]
    %v56 = vld [vmem:[%s0 + $0x8] sm:$0xf]
    %v57 = vld [vmem:[%s0 + $0xc] sm:$0xf]
    %v58 = vld [vmem:[%s0 + $0x10] sm:$0xf]
    %v59 = vld [vmem:[%s0 + $0x14] sm:$0xf]
    %v60 = vld [vmem:[%s0 + $0x18] sm:$0xf]
    %v61 = vld [vmem:[%s0 + $0x1c] sm:$0xf]
    %v62 = vld [vmem:[%s0 + $0x20] sm:$0xf]
    %v63 = vld [vmem:[%s0 + $0x24] sm:$0xf]
    %v64 = vld [vmem:[%s0 + $0x28] sm:$0xf]
    %v65 = vld [vmem:[%s0 + $0x2c] sm:$0xf]
    %v66 = vld [vmem:[%s0 + $0x30] sm:$0xf]
    %v67 = vld [vmem:[%s0 + $0x34] sm:$0xf]
    %v68 = vld [vmem:[%s0 + $0x38] sm:$0xf]
    %v69 = vld [vmem:[%s0 + $0x3c] sm:$0xf]
    %v70 = vld [vmem:[%s1] sm:$0xf]
    %v71 = vld [vmem:[%s1 + $0x4] sm:$0xf]
    %v72 = vld [vmem:[%s1 + $0x8] sm:$0xf]
    %v73 = vld [vmem:[%s1 + $0xc] sm:$0xf]
    %v74 = vld [vmem:[%s1 + $0x10] sm:$0xf]
    %v75 = vld [vmem:[%s1 + $0x14] sm:$0xf]
    %v76 = vld [vmem:[%s1 + $0x18] sm:$0xf]
    %v77 = vld [vmem:[%s1 + $0x1c] sm:$0xf]
    %v78 = vld [vmem:[%s1 + $0x20] sm:$0xf]
    %v79 = vld [vmem:[%s1 + $0x24] sm:$0xf]
    %v80 = vld [vmem:[%s1 + $0x28] sm:$0xf]
    %v81 = vld [vmem:[%s1 + $0x2c] sm:$0xf]
    %v82 = vld [vmem:[%s1 + $0x30] sm:$0xf]
    %v83 = vld [vmem:[%s1 + $0x34] sm:$0xf]
    %v84 = vld [vmem:[%s1 + $0x38] sm:$0xf]
    %v85 = vld [vmem:[%s1 + $0x3c] sm:$0xf]
    %v102 = vunpack.c.l.b16 %v54
    %v103 = vunpack.c.l.b16 %v55
    %v104 = vunpack.c.l.b16 %v56
    %v105 = vunpack.c.l.b16 %v57
    %v106 = vunpack.c.l.b16 %v58
    %v107 = vunpack.c.l.b16 %v59
    %v108 = vunpack.c.l.b16 %v60
    %v109 = vunpack.c.l.b16 %v61
    %v110 = vunpack.c.l.b16 %v62
    %v111 = vunpack.c.l.b16 %v63
    %v112 = vunpack.c.l.b16 %v64
    %v113 = vunpack.c.l.b16 %v65
    %v114 = vunpack.c.l.b16 %v66
    %v115 = vunpack.c.l.b16 %v67
    %v116 = vunpack.c.l.b16 %v68
    %v117 = vunpack.c.l.b16 %v69
    %v118 = vpack.c.b16 %v103, %v102
    %v119 = vpack.c.b16 %v105, %v104
    %v120 = vpack.c.b16 %v107, %v106
    %v121 = vpack.c.b16 %v109, %v108
    %v122 = vpack.c.b16 %v111, %v110
    %v123 = vpack.c.b16 %v113, %v112
    %v124 = vpack.c.b16 %v115, %v114
    %v125 = vpack.c.b16 %v117, %v116
    %v150 = vunpack.c.l.b16 %v70
    %v151 = vunpack.c.l.b16 %v71
    %v152 = vunpack.c.l.b16 %v72
    %v153 = vunpack.c.l.b16 %v73
    %v154 = vunpack.c.l.b16 %v74
    %v155 = vunpack.c.l.b16 %v75
    %v156 = vunpack.c.l.b16 %v76
    %v157 = vunpack.c.l.b16 %v77
    %v158 = vunpack.c.l.b16 %v78
    %v159 = vunpack.c.l.b16 %v79
    %v160 = vunpack.c.l.b16 %v80
    %v161 = vunpack.c.l.b16 %v81
    %v162 = vunpack.c.l.b16 %v82
    %v163 = vunpack.c.l.b16 %v83
    %v164 = vunpack.c.l.b16 %v84
    %v165 = vunpack.c.l.b16 %v85
    %v166 = vpack.c.b16 %v151, %v150
    %v167 = vpack.c.b16 %v153, %v152
    %v168 = vpack.c.b16 %v155, %v154
    %v169 = vpack.c.b16 %v157, %v156
    %v170 = vpack.c.b16 %v159, %v158
    %v171 = vpack.c.b16 %v161, %v160
    %v172 = vpack.c.b16 %v163, %v162
    %v173 = vpack.c.b16 %v165, %v164
    %182 = vmatpush.bf16.msra.mxu0 %v173
    %183 = vmatpush.bf16.msra.mxu0 %v172
    %184 = vmatpush.bf16.msra.mxu0 %v171
    %185 = vmatpush.bf16.msra.mxu0 %v170
    %186 = vmatpush.bf16.msra.mxu0 %v169
    %187 = vmatpush.bf16.msra.mxu0 %v168
    %188 = vmatpush.bf16.msra.mxu0 %v167
    %189 = vmatpush.bf16.msra.mxu0 %v166
    %190 = vmatmul.bf16.gmra.mxu0 %v118
    %v191 = vpop.f32.mrf.mxu0
    %v192 = vadd.f32 0.0, %v191
    %v193 = vpop.f32.mrf.mxu0
    %v194 = vadd.f32 0.0, %v193
    %195 = vmatmul.bf16.gmra.mxu0 %v119
    %v196 = vpop.f32.mrf.mxu0
    %v197 = vadd.f32 0.0, %v196
    %v198 = vpop.f32.mrf.mxu0
    %v199 = vadd.f32 0.0, %v198
    %200 = vmatmul.bf16.gmra.mxu0 %v120
    %v201 = vpop.f32.mrf.mxu0
    %v202 = vadd.f32 0.0, %v201
    %v203 = vpop.f32.mrf.mxu0
    %v204 = vadd.f32 0.0, %v203
    %205 = vmatmul.bf16.gmra.mxu0 %v121
    %v206 = vpop.f32.mrf.mxu0
    %v207 = vadd.f32 0.0, %v206
    %v208 = vpop.f32.mrf.mxu0
    %v209 = vadd.f32 0.0, %v208
    %210 = vmatmul.bf16.gmra.mxu0 %v122
    %v211 = vpop.f32.mrf.mxu0
    %v212 = vadd.f32 0.0, %v211
    %v213 = vpop.f32.mrf.mxu0
    %v214 = vadd.f32 0.0, %v213
    %215 = vmatmul.bf16.gmra.mxu0 %v123
    %v216 = vpop.f32.mrf.mxu0
    %v217 = vadd.f32 0.0, %v216
    %v218 = vpop.f32.mrf.mxu0
    %v219 = vadd.f32 0.0, %v218
    %220 = vmatmul.bf16.gmra.mxu0 %v124
    %v221 = vpop.f32.mrf.mxu0
    %v222 = vadd.f32 0.0, %v221
    %v223 = vpop.f32.mrf.mxu0
    %v224 = vadd.f32 0.0, %v223
    %225 = vmatmul.bf16.gmra.mxu0 %v125
    %v226 = vpop.f32.mrf.mxu0
    %v227 = vadd.f32 0.0, %v226
    %v228 = vpop.f32.mrf.mxu0
    %v229 = vadd.f32 0.0, %v228
    %230 = vdwg.mxu0
    %v231 = vadd.f32 %v38, %v192
    %v232 = vadd.f32 %v39, %v194
    %v233 = vadd.f32 %v40, %v197
    %v234 = vadd.f32 %v41, %v199
    %v235 = vadd.f32 %v42, %v202
    %v236 = vadd.f32 %v43, %v204
    %v237 = vadd.f32 %v44, %v207
    %v238 = vadd.f32 %v45, %v209
    %v239 = vadd.f32 %v46, %v212
    %v240 = vadd.f32 %v47, %v214
    %v241 = vadd.f32 %v48, %v217
    %v242 = vadd.f32 %v49, %v219
    %v243 = vadd.f32 %v50, %v222
    %v244 = vadd.f32 %v51, %v224
    %v245 = vadd.f32 %v52, %v227
    %v246 = vadd.f32 %v53, %v229
    %247 = vst [vmem:[#allocation2] sm:$0xff] %v231
    %248 = vst [vmem:[#allocation2 + $0x8] sm:$0xff] %v232
    %249 = vst [vmem:[#allocation2 + $0x10] sm:$0xff] %v233
    %250 = vst [vmem:[#allocation2 + $0x18] sm:$0xff] %v234
    %251 = vst [vmem:[#allocation2 + $0x20] sm:$0xff] %v235
    %252 = vst [vmem:[#allocation2 + $0x28] sm:$0xff] %v236
    %253 = vst [vmem:[#allocation2 + $0x30] sm:$0xff] %v237
    %254 = vst [vmem:[#allocation2 + $0x38] sm:$0xff] %v238
    %255 = vst [vmem:[#allocation2 + $0x40] sm:$0xff] %v239
    %256 = vst [vmem:[#allocation2 + $0x48] sm:$0xff] %v240
    %257 = vst [vmem:[#allocation2 + $0x50] sm:$0xff] %v241
    %258 = vst [vmem:[#allocation2 + $0x58] sm:$0xff] %v242
    %259 = vst [vmem:[#allocation2 + $0x60] sm:$0xff] %v243
    %260 = vst [vmem:[#allocation2 + $0x68] sm:$0xff] %v244
    %261 = vst [vmem:[#allocation2 + $0x70] sm:$0xff] %v245
    %262 = vst [vmem:[#allocation2 + $0x78] sm:$0xff] %v246
    // Predicated region
    $region22: #{attn_block_forward.7} parent=1 // pred_check
      %p263 = pneg %p18
    $region23: #{attn_block_forward.7} parent=1 // pred_check_branch
      %265 = sbr.rel (%p263) target = $region25
    $region24: #{attn_block_forward.7} parent=1 // pred_region
      %v266 = vld [vmem:[#allocation2] sm:$0xff]
      %v267 = vld [vmem:[#allocation2 + $0x8] sm:$0xff]
      %v268 = vld [vmem:[#allocation2 + $0x10] sm:$0xff]
      %v269 = vld [vmem:[#allocation2 + $0x18] sm:$0xff]
      %v270 = vld [vmem:[#allocation2 + $0x20] sm:$0xff]
      %v271 = vld [vmem:[#allocation2 + $0x28] sm:$0xff]
      %v272 = vld [vmem:[#allocation2 + $0x30] sm:$0xff]
      %v273 = vld [vmem:[#allocation2 + $0x38] sm:$0xff]
      %v274 = vld [vmem:[#allocation2 + $0x40] sm:$0xff]
      %v275 = vld [vmem:[#allocation2 + $0x48] sm:$0xff]
      %v276 = vld [vmem:[#allocation2 + $0x50] sm:$0xff]
      %v277 = vld [vmem:[#allocation2 + $0x58] sm:$0xff]
      %v278 = vld [vmem:[#allocation2 + $0x60] sm:$0xff]
      %v279 = vld [vmem:[#allocation2 + $0x68] sm:$0xff]
      %v280 = vld [vmem:[#allocation2 + $0x70] sm:$0xff]
      %v281 = vld [vmem:[#allocation2 + $0x78] sm:$0xff]
      %v282 = vld [vmem:[%s2] sm:$0x1]
      %v284 = vperm.slane %v282, 0
      %v286 = vadd.f32 %v266, %v284
      %v287 = vadd.f32 %v267, %v284
      %v288 = vadd.f32 %v268, %v284
      %v289 = vadd.f32 %v269, %v284
      %v290 = vadd.f32 %v270, %v284
      %v291 = vadd.f32 %v271, %v284
      %v292 = vadd.f32 %v272, %v284
      %v293 = vadd.f32 %v273, %v284
      %v294 = vadd.f32 %v274, %v284
      %v295 = vadd.f32 %v275, %v284
      %v296 = vadd.f32 %v276, %v284
      %v297 = vadd.f32 %v277, %v284
      %v298 = vadd.f32 %v278, %v284
      %v299 = vadd.f32 %v279, %v284
      %v300 = vadd.f32 %v280, %v284
      %v301 = vadd.f32 %v281, %v284
      %v302 = vld [vmem:[%s3] sm:$0xff]
      %v303 = vld [vmem:[%s3 + $0x8] sm:$0xff]
      %v304 = vld [vmem:[%s3 + $0x10] sm:$0xff]
      %v305 = vld [vmem:[%s3 + $0x18] sm:$0xff]
      %v306 = vld [vmem:[%s3 + $0x20] sm:$0xff]
      %v307 = vld [vmem:[%s3 + $0x28] sm:$0xff]
      %v308 = vld [vmem:[%s3 + $0x30] sm:$0xff]
      %v309 = vld [vmem:[%s3 + $0x38] sm:$0xff]
      %v310 = vld [vmem:[%s3 + $0x40] sm:$0xff]
      %v311 = vld [vmem:[%s3 + $0x48] sm:$0xff]
      %v312 = vld [vmem:[%s3 + $0x50] sm:$0xff]
      %v313 = vld [vmem:[%s3 + $0x58] sm:$0xff]
      %v314 = vld [vmem:[%s3 + $0x60] sm:$0xff]
      %v315 = vld [vmem:[%s3 + $0x68] sm:$0xff]
      %v316 = vld [vmem:[%s3 + $0x70] sm:$0xff]
      %v317 = vld [vmem:[%s3 + $0x78] sm:$0xff]
      %v318 = vadd.f32 %v286, %v302
      %v319 = vadd.f32 %v287, %v303
      %v320 = vadd.f32 %v288, %v304
      %v321 = vadd.f32 %v289, %v305
      %v322 = vadd.f32 %v290, %v306
      %v323 = vadd.f32 %v291, %v307
      %v324 = vadd.f32 %v292, %v308
      %v325 = vadd.f32 %v293, %v309
      %v326 = vadd.f32 %v294, %v310
      %v327 = vadd.f32 %v295, %v311
      %v328 = vadd.f32 %v296, %v312
      %v329 = vadd.f32 %v297, %v313
      %v330 = vadd.f32 %v298, %v314
      %v331 = vadd.f32 %v299, %v315
      %v332 = vadd.f32 %v300, %v316
      %v333 = vadd.f32 %v301, %v317
      %334 = vst [vmem:[#allocation3] sm:$0xff] %v318
      %335 = vst [vmem:[#allocation3 + $0x8] sm:$0xff] %v319
      %336 = vst [vmem:[#allocation3 + $0x10] sm:$0xff] %v320
      %337 = vst [vmem:[#allocation3 + $0x18] sm:$0xff] %v321
      %338 = vst [vmem:[#allocation3 + $0x20] sm:$0xff] %v322
      %339 = vst [vmem:[#allocation3 + $0x28] sm:$0xff] %v323
      %340 = vst [vmem:[#allocation3 + $0x30] sm:$0xff] %v324
      %341 = vst [vmem:[#allocation3 + $0x38] sm:$0xff] %v325
      %342 = vst [vmem:[#allocation3 + $0x40] sm:$0xff] %v326
      %343 = vst [vmem:[#allocation3 + $0x48] sm:$0xff] %v327
      %344 = vst [vmem:[#allocation3 + $0x50] sm:$0xff] %v328
      %345 = vst [vmem:[#allocation3 + $0x58] sm:$0xff] %v329
      %346 = vst [vmem:[#allocation3 + $0x60] sm:$0xff] %v330
      %347 = vst [vmem:[#allocation3 + $0x68] sm:$0xff] %v331
      %348 = vst [vmem:[#allocation3 + $0x70] sm:$0xff] %v332
      %349 = vst [vmem:[#allocation3 + $0x78] sm:$0xff] %v333
    $region25: #{attn_block_forward.7} parent=1 // pred_fallthru
      _
    // Predicated region
    $region26: #{attn_block_forward.7} parent=1 // pred_check
      _
    $region27: #{attn_block_forward.7} parent=1 // pred_check_branch
      %351 = sbr.rel (0) target = $region29
    $region28: #{attn_block_forward.7} parent=1 // pred_region
      %353 = vsyncadd [#allocation4], 0
      %s354 = sshll.u32 [#allocation3], 4
      %s355 = int_to_ptr.vmem [resolvable:$true] %s354
      %s356 = sshll.u32 %s4, 4
      %s357 = int_to_ptr.hbm [resolvable:$true] %s356
      %362 = dma.vmem_to_hbm [thread:$0]  %s355, 2048, %s357, [#allocation4], 128, 128, 8
    $region29: #{attn_block_forward.7} parent=1 // pred_fallthru
      _
    // Predicated region
    $region30: #{attn_block_forward.7} parent=1 // pred_check
      _
    $region31: #{attn_block_forward.7} parent=1 // pred_check_branch
      %364 = sbr.rel (0) target = $region33
    $region32: #{attn_block_forward.7} parent=1 // pred_region
      %366 = dma.done [#allocation4], 2048
    $region33: #{attn_block_forward.7} parent=1 // pred_fallthru
      _
    %367 = vsyncpa [#allocation4], 1

</llo_original>
